<compile_context>
chip_gen: v6e
topology: v6e:2x2x1
jax: 0.10.0
libtpu: 0.0.40
codegen_flags: <defaults>
</compile_context>

<pallas_src>
import math
import functools

import jax
import jax.numpy as jnp
from jax.experimental import pallas as pl
from jax.experimental.pallas import tpu as pltpu


def _mha_kernel(xq_ref, xkv_ref,
                wq_ref, wk_ref, wv_ref, wo_ref,
                bias_ref, out_ref, *, n_heads):
    Bb, n_q, d_emb = xq_ref.shape
    _, n_kv, _ = xkv_ref.shape
    d_key = wq_ref.shape[1]
    d_value = wv_ref.shape[1]
    dhk = d_key // n_heads
    dhv = d_value // n_heads

    # Flatten the batch block so each projection is ONE full-width MXU matmul.
    xq = xq_ref[...].reshape(Bb * n_q, d_emb).astype(jnp.float32)
    xkv = xkv_ref[...].reshape(Bb * n_kv, d_emb).astype(jnp.float32)

    # Packed biases: rows = [b_q*scale, b_k, b_v, b_out] (scale folded in wrapper).
    bq = bias_ref[0:1, :d_key]
    bk = bias_ref[1:2, :d_key]
    bv = bias_ref[2:3, :d_value]
    bo = bias_ref[3:4, :d_value]

    # Input projections over the whole batch (W_q already carries 1/sqrt(d_head)).
    q = jnp.dot(xq, wq_ref[...], preferred_element_type=jnp.float32) + bq
    k = jnp.dot(xkv, wk_ref[...], preferred_element_type=jnp.float32) + bk
    v = jnp.dot(xkv, wv_ref[...], preferred_element_type=jnp.float32) + bv

    q3 = q.reshape(Bb, n_q, d_key)
    k3 = k.reshape(Bb, n_kv, d_key)
    v3 = v.reshape(Bb, n_kv, d_value)

    head_outs = []
    for h in range(n_heads):  # static unroll; each einsum is batched over the batch dim
        qh = q3[:, :, h * dhk:(h + 1) * dhk]   # (Bb, n_q, dhk)
        kh = k3[:, :, h * dhk:(h + 1) * dhk]   # (Bb, n_kv, dhk)
        vh = v3[:, :, h * dhv:(h + 1) * dhv]   # (Bb, n_kv, dhv)

        # QK^T without a materialized transpose: contract the last dims directly.
        logits = jnp.einsum('bqd,bkd->bqk', qh, kh,
                            preferred_element_type=jnp.float32)
        m = jnp.max(logits, axis=-1, keepdims=True)
        e = jnp.exp(logits - m)
        s = jnp.sum(e, axis=-1, keepdims=True)
        probs = e / s  # exact divide keeps 1e-5 parity with the reference
        # TODO(synk): attention-prob dropout is a no-op in eval mode, so it is omitted.
        oh = jnp.einsum('bqk,bkd->bqd', probs, vh,
                        preferred_element_type=jnp.float32)
        head_outs.append(oh.reshape(Bb * n_q, dhv))

    x = jnp.concatenate(head_outs, axis=-1)  # (Bb*n_q, d_value)

    # Mixing layer W_out (present because n_heads > 1): one matmul for the whole batch.
    out = jnp.dot(x, wo_ref[...], preferred_element_type=jnp.float32) + bo
    out_ref[...] = out.reshape(Bb, n_q, d_value).astype(out_ref.dtype)


def multihead_attention(x_q, x_kv, params, n_heads, *, batch_block=None):
    B, n_q, d_emb = x_q.shape
    _, n_kv, _ = x_kv.shape
    d_key = params["W_q"].shape[0]
    d_value = params["W_v"].shape[0]
    scale = 1.0 / math.sqrt(d_key // n_heads)

    # Whole batch in one grid step by default (best on v5e/v6e, 1 TC).  On v7x,
    # pass batch_block=B//2 to get a 2-wide "parallel" axis for the two TCs.
    if batch_block is None:
        batch_block = B
    assert B % batch_block == 0, "batch must be divisible by batch_block"
    n_blocks = B // batch_block

    # Glue (plain JAX): pre-transpose weights so the kernel does x @ W, and
    # fold the 1/sqrt(d_head) scale into W_q / b_q (free, no in-kernel mul).
    wq_t = (params["W_q"].T * scale).astype(jnp.float32)   # (d_emb, d_key)
    wk_t = params["W_k"].T.astype(jnp.float32)             # (d_emb, d_key)
    wv_t = params["W_v"].T.astype(jnp.float32)             # (d_emb, d_value)
    wo_t = params["W_out"].T.astype(jnp.float32)           # (d_value, d_value)

    # Pack all four biases into one block (single DMA instead of four tiny ones).
    d_bias = max(d_key, d_value)
    bias_pack = jnp.zeros((4, d_bias), jnp.float32)
    bias_pack = bias_pack.at[0, :d_key].set(params["b_q"].astype(jnp.float32) * scale)
    bias_pack = bias_pack.at[1, :d_key].set(params["b_k"].astype(jnp.float32))
    bias_pack = bias_pack.at[2, :d_value].set(params["b_v"].astype(jnp.float32))
    bias_pack = bias_pack.at[3, :d_value].set(params["b_out"].astype(jnp.float32))

    kernel = functools.partial(_mha_kernel, n_heads=n_heads)
    return pl.pallas_call(
        kernel,
        out_shape=jax.ShapeDtypeStruct((B, n_q, d_value), x_q.dtype),
        grid=(n_blocks,),
        in_specs=[
            pl.BlockSpec((batch_block, n_q, d_emb), lambda b: (b, 0, 0)),
            pl.BlockSpec((batch_block, n_kv, d_emb), lambda b: (b, 0, 0)),
            pl.BlockSpec((d_emb, d_key), lambda b: (0, 0)),
            pl.BlockSpec((d_emb, d_key), lambda b: (0, 0)),
            pl.BlockSpec((d_emb, d_value), lambda b: (0, 0)),
            pl.BlockSpec((d_value, d_value), lambda b: (0, 0)),
            pl.BlockSpec((4, d_bias), lambda b: (0, 0)),
        ],
        out_specs=pl.BlockSpec((batch_block, n_q, d_value), lambda b: (b, 0, 0)),
        compiler_params=pltpu.CompilerParams(dimension_semantics=("parallel",)),
    )(x_q, x_kv, wq_t, wk_t, wv_t, wo_t, bias_pack)


def reference_forward(x_q, x_kv, params, n_heads):
    """Pure-JAX mirror of the PyTorch forward (eval mode), for verification."""
    q = x_q @ params["W_q"].T + params["b_q"]
    k = x_kv @ params["W_k"].T + params["b_k"]
    v = x_kv @ params["W_v"].T + params["b_v"]

    def reshape(t):
        B, n, d_ = t.shape
        dh = d_ // n_heads
        return t.reshape(B, n, n_heads, dh).transpose(0, 2, 1, 3).reshape(B * n_heads, n, dh)

    d_head_key = k.shape[-1] // n_heads
    d_head_value = v.shape[-1] // n_heads
    B, n_q = q.shape[0], q.shape[1]
    qh, kh, vh = reshape(q), reshape(k), reshape(v)
    logits = qh @ kh.transpose(0, 2, 1) / math.sqrt(d_head_key)
    probs = jax.nn.softmax(logits, axis=-1)
    x = probs @ vh
    x = x.reshape(B, n_heads, n_q, d_head_value).transpose(0, 2, 1, 3).reshape(
        B, n_q, n_heads * d_head_value)
    return x @ params["W_out"].T + params["b_out"]


if __name__ == "__main__":
    # Module config (consistent with MultiheadAttention(d_embedding=32, n_heads=4, dropout=0.2)).
    batch, n_q, n_kv = 2, 8, 16
    d_embedding, n_heads = 32, 4
    d_key = d_value = d_embedding  # defaults when d_key/d_value are None

    key = jax.random.PRNGKey(0)
    k_xq, k_xkv, k_wq, k_wk, k_wv, k_wo = jax.random.split(key, 6)

    x_q = jax.random.normal(k_xq, (batch, n_q, d_embedding), dtype=jnp.float32)
    x_kv = jax.random.normal(k_xkv, (batch, n_kv, d_embedding), dtype=jnp.float32)

    # Deterministic parameter init.  Per reset_parameters with 'kaiming':
    # projection weights keep their (random) init, all biases are zero.
    params = {
        "W_q": 0.1 * jax.random.normal(k_wq, (d_key, d_embedding), dtype=jnp.float32),
        "W_k": 0.1 * jax.random.normal(k_wk, (d_key, d_embedding), dtype=jnp.float32),
        "W_v": 0.1 * jax.random.normal(k_wv, (d_value, d_embedding), dtype=jnp.float32),
        "W_out": 0.1 * jax.random.normal(k_wo, (d_value, d_value), dtype=jnp.float32),
        "b_q": jnp.zeros((d_key,), jnp.float32),
        "b_k": jnp.zeros((d_key,), jnp.float32),
        "b_v": jnp.zeros((d_value,), jnp.float32),
        "b_out": jnp.zeros((d_value,), jnp.float32),
    }

    out = multihead_attention(x_q, x_kv, params, n_heads)
    out = jax.block_until_ready(out)

    ref = reference_forward(x_q, x_kv, params, n_heads)
    assert out.shape == (batch, n_q, d_value)
    assert jnp.allclose(out, ref, atol=1e-5, rtol=1e-5), "mismatch vs JAX reference"

    print("KERNEL_OK")
</pallas_src>

<mosaic_0001>
module attributes {stable_mosaic.version = 11 : i64} {
  func.func @_mha_kernel(%arg0: i32, %arg1: memref<2x8x32xf32, #tpu.memory_space<vmem>>, %arg2: memref<2x16x32xf32, #tpu.memory_space<vmem>>, %arg3: memref<32x32xf32, #tpu.memory_space<vmem>>, %arg4: memref<32x32xf32, #tpu.memory_space<vmem>>, %arg5: memref<32x32xf32, #tpu.memory_space<vmem>>, %arg6: memref<32x32xf32, #tpu.memory_space<vmem>>, %arg7: memref<4x32xf32, #tpu.memory_space<vmem>>, %arg8: memref<2x8x32xf32, #tpu.memory_space<vmem>>) attributes {dimension_semantics = [#tpu.dimension_semantics<parallel>], iteration_bounds = array<i64: 1>, scalar_prefetch = 0 : i64, scratch_operands = 0 : i64, tpu.core_type = #tpu.core_type<tc>, window_params = [{transform_indices = @transform_0, window_bounds = array<i64: 2, 8, 32>}, {transform_indices = @transform_1, window_bounds = array<i64: 2, 16, 32>}, {pipeline_mode = #tpu.pipeline_mode<synchronous>, transform_indices = @transform_2, window_bounds = array<i64: 32, 32>}, {pipeline_mode = #tpu.pipeline_mode<synchronous>, transform_indices = @transform_3, window_bounds = array<i64: 32, 32>}, {pipeline_mode = #tpu.pipeline_mode<synchronous>, transform_indices = @transform_4, window_bounds = array<i64: 32, 32>}, {pipeline_mode = #tpu.pipeline_mode<synchronous>, transform_indices = @transform_5, window_bounds = array<i64: 32, 32>}, {pipeline_mode = #tpu.pipeline_mode<synchronous>, transform_indices = @transform_6, window_bounds = array<i64: 4, 32>}, {transform_indices = @transform_7, window_bounds = array<i64: 2, 8, 32>}]} {
    %c0 = arith.constant 0 : index
    %c0_0 = arith.constant 0 : index
    %c0_1 = arith.constant 0 : index
    %0 = vector.load %arg1[%c0, %c0_0, %c0_1] : memref<2x8x32xf32, #tpu.memory_space<vmem>>, vector<2x8x32xf32>
    %1 = vector.shape_cast %0 : vector<2x8x32xf32> to vector<16x32xf32>
    %c0_2 = arith.constant 0 : index
    %c0_3 = arith.constant 0 : index
    %c0_4 = arith.constant 0 : index
    %2 = vector.load %arg2[%c0_2, %c0_3, %c0_4] : memref<2x16x32xf32, #tpu.memory_space<vmem>>, vector<2x16x32xf32>
    %3 = vector.shape_cast %2 : vector<2x16x32xf32> to vector<32x32xf32>
    %c0_5 = arith.constant 0 : index
    %c0_6 = arith.constant 0 : index
    %4 = vector.load %arg7[%c0_5, %c0_6] : memref<4x32xf32, #tpu.memory_space<vmem>>, vector<1x32xf32>
    %c1 = arith.constant 1 : index
    %c0_7 = arith.constant 0 : index
    %5 = vector.load %arg7[%c1, %c0_7] : memref<4x32xf32, #tpu.memory_space<vmem>>, vector<1x32xf32>
    %c2 = arith.constant 2 : index
    %c0_8 = arith.constant 0 : index
    %6 = vector.load %arg7[%c2, %c0_8] : memref<4x32xf32, #tpu.memory_space<vmem>>, vector<1x32xf32>
    %c3 = arith.constant 3 : index
    %c0_9 = arith.constant 0 : index
    %7 = vector.load %arg7[%c3, %c0_9] : memref<4x32xf32, #tpu.memory_space<vmem>>, vector<1x32xf32>
    %c0_10 = arith.constant 0 : index
    %c0_11 = arith.constant 0 : index
    %8 = vector.load %arg3[%c0_10, %c0_11] : memref<32x32xf32, #tpu.memory_space<vmem>>, vector<32x32xf32>
    %cst = arith.constant dense<0.000000e+00> : vector<16x32xf32>
    %9 = tpu.matmul %1, %8, %cst {dimension_numbers = #tpu.dot_dimension_numbers<[1], [0], [0], [1], [0, 0, 1, 1], [], []>} : vector<16x32xf32>, vector<32x32xf32>, vector<16x32xf32> -> vector<16x32xf32>
    %10 = vector.broadcast %4 : vector<1x32xf32> to vector<16x32xf32>
    %11 = arith.addf %9, %10 : vector<16x32xf32>
    %c0_12 = arith.constant 0 : index
    %c0_13 = arith.constant 0 : index
    %12 = vector.load %arg4[%c0_12, %c0_13] : memref<32x32xf32, #tpu.memory_space<vmem>>, vector<32x32xf32>
    %cst_14 = arith.constant dense<0.000000e+00> : vector<32x32xf32>
    %13 = tpu.matmul %3, %12, %cst_14 {dimension_numbers = #tpu.dot_dimension_numbers<[1], [0], [0], [1], [0, 0, 1, 1], [], []>} : vector<32x32xf32>, vector<32x32xf32>, vector<32x32xf32> -> vector<32x32xf32>
    %14 = vector.broadcast %5 : vector<1x32xf32> to vector<32x32xf32>
    %15 = arith.addf %13, %14 : vector<32x32xf32>
    %c0_15 = arith.constant 0 : index
    %c0_16 = arith.constant 0 : index
    %16 = vector.load %arg5[%c0_15, %c0_16] : memref<32x32xf32, #tpu.memory_space<vmem>>, vector<32x32xf32>
    %cst_17 = arith.constant dense<0.000000e+00> : vector<32x32xf32>
    %17 = tpu.matmul %3, %16, %cst_17 {dimension_numbers = #tpu.dot_dimension_numbers<[1], [0], [0], [1], [0, 0, 1, 1], [], []>} : vector<32x32xf32>, vector<32x32xf32>, vector<32x32xf32> -> vector<32x32xf32>
    %18 = vector.broadcast %6 : vector<1x32xf32> to vector<32x32xf32>
    %19 = arith.addf %17, %18 : vector<32x32xf32>
    %20 = vector.shape_cast %11 : vector<16x32xf32> to vector<2x8x32xf32>
    %21 = vector.shape_cast %15 : vector<32x32xf32> to vector<2x16x32xf32>
    %22 = vector.shape_cast %19 : vector<32x32xf32> to vector<2x16x32xf32>
    %23 = vector.extract_strided_slice %20 {offsets = [0, 0, 0], sizes = [2, 8, 8], strides = [1, 1, 1]} : vector<2x8x32xf32> to vector<2x8x8xf32>
    %24 = vector.extract_strided_slice %21 {offsets = [0, 0, 0], sizes = [2, 16, 8], strides = [1, 1, 1]} : vector<2x16x32xf32> to vector<2x16x8xf32>
    %25 = vector.extract_strided_slice %22 {offsets = [0, 0, 0], sizes = [2, 16, 8], strides = [1, 1, 1]} : vector<2x16x32xf32> to vector<2x16x8xf32>
    "tpu.trace_start"() <{level = 10 : i32, message = "bqd,bkd->bqk"}> : () -> ()
    %cst_18 = arith.constant dense<0.000000e+00> : vector<2x8x16xf32>
    %26 = tpu.matmul %23, %24, %cst_18 {dimension_numbers = #tpu.dot_dimension_numbers<[2], [2], [1], [1], [0, 0, 0, 1, 1, 1], [0], [0]>} : vector<2x8x8xf32>, vector<2x16x8xf32>, vector<2x8x16xf32> -> vector<2x8x16xf32>
    "tpu.trace_stop"() : () -> ()
    %cst_19 = arith.constant dense<0xFF800000> : vector<2x8xf32>
    %27 = vector.multi_reduction <maximumf>, %26, %cst_19 [2] : vector<2x8x16xf32> to vector<2x8xf32>
    %28 = vector.shape_cast %27 : vector<2x8xf32> to vector<2x8x1xf32>
    %29 = vector.broadcast %28 : vector<2x8x1xf32> to vector<2x8x16xf32>
    %30 = arith.subf %26, %29 : vector<2x8x16xf32>
    %31 = math.exp %30 : vector<2x8x16xf32>
    %cst_20 = arith.constant dense<0.000000e+00> : vector<2x8xf32>
    %32 = vector.multi_reduction <add>, %31, %cst_20 [2] : vector<2x8x16xf32> to vector<2x8xf32>
    %33 = vector.shape_cast %32 : vector<2x8xf32> to vector<2x8x1xf32>
    %34 = vector.broadcast %33 : vector<2x8x1xf32> to vector<2x8x16xf32>
    %35 = arith.divf %31, %34 : vector<2x8x16xf32>
    "tpu.trace_start"() <{level = 10 : i32, message = "bqk,bkd->bqd"}> : () -> ()
    %cst_21 = arith.constant dense<0.000000e+00> : vector<2x8x8xf32>
    %36 = tpu.matmul %35, %25, %cst_21 {dimension_numbers = #tpu.dot_dimension_numbers<[2], [1], [1], [2], [0, 0, 0, 1, 1, 2], [0], [0]>} : vector<2x8x16xf32>, vector<2x16x8xf32>, vector<2x8x8xf32> -> vector<2x8x8xf32>
    "tpu.trace_stop"() : () -> ()
    %37 = vector.shape_cast %36 : vector<2x8x8xf32> to vector<16x8xf32>
    %38 = vector.extract_strided_slice %20 {offsets = [0, 0, 8], sizes = [2, 8, 8], strides = [1, 1, 1]} : vector<2x8x32xf32> to vector<2x8x8xf32>
    %39 = vector.extract_strided_slice %21 {offsets = [0, 0, 8], sizes = [2, 16, 8], strides = [1, 1, 1]} : vector<2x16x32xf32> to vector<2x16x8xf32>
    %40 = vector.extract_strided_slice %22 {offsets = [0, 0, 8], sizes = [2, 16, 8], strides = [1, 1, 1]} : vector<2x16x32xf32> to vector<2x16x8xf32>
    "tpu.trace_start"() <{level = 10 : i32, message = "bqd,bkd->bqk"}> : () -> ()
    %cst_22 = arith.constant dense<0.000000e+00> : vector<2x8x16xf32>
    %41 = tpu.matmul %38, %39, %cst_22 {dimension_numbers = #tpu.dot_dimension_numbers<[2], [2], [1], [1], [0, 0, 0, 1, 1, 1], [0], [0]>} : vector<2x8x8xf32>, vector<2x16x8xf32>, vector<2x8x16xf32> -> vector<2x8x16xf32>
    "tpu.trace_stop"() : () -> ()
    %cst_23 = arith.constant dense<0xFF800000> : vector<2x8xf32>
    %42 = vector.multi_reduction <maximumf>, %41, %cst_23 [2] : vector<2x8x16xf32> to vector<2x8xf32>
    %43 = vector.shape_cast %42 : vector<2x8xf32> to vector<2x8x1xf32>
    %44 = vector.broadcast %43 : vector<2x8x1xf32> to vector<2x8x16xf32>
    %45 = arith.subf %41, %44 : vector<2x8x16xf32>
    %46 = math.exp %45 : vector<2x8x16xf32>
    %cst_24 = arith.constant dense<0.000000e+00> : vector<2x8xf32>
    %47 = vector.multi_reduction <add>, %46, %cst_24 [2] : vector<2x8x16xf32> to vector<2x8xf32>
    %48 = vector.shape_cast %47 : vector<2x8xf32> to vector<2x8x1xf32>
    %49 = vector.broadcast %48 : vector<2x8x1xf32> to vector<2x8x16xf32>
    %50 = arith.divf %46, %49 : vector<2x8x16xf32>
    "tpu.trace_start"() <{level = 10 : i32, message = "bqk,bkd->bqd"}> : () -> ()
    %cst_25 = arith.constant dense<0.000000e+00> : vector<2x8x8xf32>
    %51 = tpu.matmul %50, %40, %cst_25 {dimension_numbers = #tpu.dot_dimension_numbers<[2], [1], [1], [2], [0, 0, 0, 1, 1, 2], [0], [0]>} : vector<2x8x16xf32>, vector<2x16x8xf32>, vector<2x8x8xf32> -> vector<2x8x8xf32>
    "tpu.trace_stop"() : () -> ()
    %52 = vector.shape_cast %51 : vector<2x8x8xf32> to vector<16x8xf32>
    %53 = vector.extract_strided_slice %20 {offsets = [0, 0, 16], sizes = [2, 8, 8], strides = [1, 1, 1]} : vector<2x8x32xf32> to vector<2x8x8xf32>
    %54 = vector.extract_strided_slice %21 {offsets = [0, 0, 16], sizes = [2, 16, 8], strides = [1, 1, 1]} : vector<2x16x32xf32> to vector<2x16x8xf32>
    %55 = vector.extract_strided_slice %22 {offsets = [0, 0, 16], sizes = [2, 16, 8], strides = [1, 1, 1]} : vector<2x16x32xf32> to vector<2x16x8xf32>
    "tpu.trace_start"() <{level = 10 : i32, message = "bqd,bkd->bqk"}> : () -> ()
    %cst_26 = arith.constant dense<0.000000e+00> : vector<2x8x16xf32>
    %56 = tpu.matmul %53, %54, %cst_26 {dimension_numbers = #tpu.dot_dimension_numbers<[2], [2], [1], [1], [0, 0, 0, 1, 1, 1], [0], [0]>} : vector<2x8x8xf32>, vector<2x16x8xf32>, vector<2x8x16xf32> -> vector<2x8x16xf32>
    "tpu.trace_stop"() : () -> ()
    %cst_27 = arith.constant dense<0xFF800000> : vector<2x8xf32>
    %57 = vector.multi_reduction <maximumf>, %56, %cst_27 [2] : vector<2x8x16xf32> to vector<2x8xf32>
    %58 = vector.shape_cast %57 : vector<2x8xf32> to vector<2x8x1xf32>
    %59 = vector.broadcast %58 : vector<2x8x1xf32> to vector<2x8x16xf32>
    %60 = arith.subf %56, %59 : vector<2x8x16xf32>
    %61 = math.exp %60 : vector<2x8x16xf32>
    %cst_28 = arith.constant dense<0.000000e+00> : vector<2x8xf32>
    %62 = vector.multi_reduction <add>, %61, %cst_28 [2] : vector<2x8x16xf32> to vector<2x8xf32>
    %63 = vector.shape_cast %62 : vector<2x8xf32> to vector<2x8x1xf32>
    %64 = vector.broadcast %63 : vector<2x8x1xf32> to vector<2x8x16xf32>
    %65 = arith.divf %61, %64 : vector<2x8x16xf32>
    "tpu.trace_start"() <{level = 10 : i32, message = "bqk,bkd->bqd"}> : () -> ()
    %cst_29 = arith.constant dense<0.000000e+00> : vector<2x8x8xf32>
    %66 = tpu.matmul %65, %55, %cst_29 {dimension_numbers = #tpu.dot_dimension_numbers<[2], [1], [1], [2], [0, 0, 0, 1, 1, 2], [0], [0]>} : vector<2x8x16xf32>, vector<2x16x8xf32>, vector<2x8x8xf32> -> vector<2x8x8xf32>
    "tpu.trace_stop"() : () -> ()
    %67 = vector.shape_cast %66 : vector<2x8x8xf32> to vector<16x8xf32>
    %68 = vector.extract_strided_slice %20 {offsets = [0, 0, 24], sizes = [2, 8, 8], strides = [1, 1, 1]} : vector<2x8x32xf32> to vector<2x8x8xf32>
    %69 = vector.extract_strided_slice %21 {offsets = [0, 0, 24], sizes = [2, 16, 8], strides = [1, 1, 1]} : vector<2x16x32xf32> to vector<2x16x8xf32>
    %70 = vector.extract_strided_slice %22 {offsets = [0, 0, 24], sizes = [2, 16, 8], strides = [1, 1, 1]} : vector<2x16x32xf32> to vector<2x16x8xf32>
    "tpu.trace_start"() <{level = 10 : i32, message = "bqd,bkd->bqk"}> : () -> ()
    %cst_30 = arith.constant dense<0.000000e+00> : vector<2x8x16xf32>
    %71 = tpu.matmul %68, %69, %cst_30 {dimension_numbers = #tpu.dot_dimension_numbers<[2], [2], [1], [1], [0, 0, 0, 1, 1, 1], [0], [0]>} : vector<2x8x8xf32>, vector<2x16x8xf32>, vector<2x8x16xf32> -> vector<2x8x16xf32>
    "tpu.trace_stop"() : () -> ()
    %cst_31 = arith.constant dense<0xFF800000> : vector<2x8xf32>
    %72 = vector.multi_reduction <maximumf>, %71, %cst_31 [2] : vector<2x8x16xf32> to vector<2x8xf32>
    %73 = vector.shape_cast %72 : vector<2x8xf32> to vector<2x8x1xf32>
    %74 = vector.broadcast %73 : vector<2x8x1xf32> to vector<2x8x16xf32>
    %75 = arith.subf %71, %74 : vector<2x8x16xf32>
    %76 = math.exp %75 : vector<2x8x16xf32>
    %cst_32 = arith.constant dense<0.000000e+00> : vector<2x8xf32>
    %77 = vector.multi_reduction <add>, %76, %cst_32 [2] : vector<2x8x16xf32> to vector<2x8xf32>
    %78 = vector.shape_cast %77 : vector<2x8xf32> to vector<2x8x1xf32>
    %79 = vector.broadcast %78 : vector<2x8x1xf32> to vector<2x8x16xf32>
    %80 = arith.divf %76, %79 : vector<2x8x16xf32>
    "tpu.trace_start"() <{level = 10 : i32, message = "bqk,bkd->bqd"}> : () -> ()
    %cst_33 = arith.constant dense<0.000000e+00> : vector<2x8x8xf32>
    %81 = tpu.matmul %80, %70, %cst_33 {dimension_numbers = #tpu.dot_dimension_numbers<[2], [1], [1], [2], [0, 0, 0, 1, 1, 2], [0], [0]>} : vector<2x8x16xf32>, vector<2x16x8xf32>, vector<2x8x8xf32> -> vector<2x8x8xf32>
    "tpu.trace_stop"() : () -> ()
    %82 = vector.shape_cast %81 : vector<2x8x8xf32> to vector<16x8xf32>
    %83 = tpu.concatenate %37, %52, %67, %82 in 1 : vector<16x8xf32>, vector<16x8xf32>, vector<16x8xf32>, vector<16x8xf32> -> vector<16x32xf32>
    %c0_34 = arith.constant 0 : index
    %c0_35 = arith.constant 0 : index
    %84 = vector.load %arg6[%c0_34, %c0_35] : memref<32x32xf32, #tpu.memory_space<vmem>>, vector<32x32xf32>
    %cst_36 = arith.constant dense<0.000000e+00> : vector<16x32xf32>
    %85 = tpu.matmul %83, %84, %cst_36 {dimension_numbers = #tpu.dot_dimension_numbers<[1], [0], [0], [1], [0, 0, 1, 1], [], []>} : vector<16x32xf32>, vector<32x32xf32>, vector<16x32xf32> -> vector<16x32xf32>
    %86 = vector.broadcast %7 : vector<1x32xf32> to vector<16x32xf32>
    %87 = arith.addf %85, %86 : vector<16x32xf32>
    %88 = vector.shape_cast %87 : vector<16x32xf32> to vector<2x8x32xf32>
    %c0_37 = arith.constant 0 : index
    %c0_38 = arith.constant 0 : index
    %c0_39 = arith.constant 0 : index
    %89 = vector.load %arg8[%c0_37, %c0_38, %c0_39] : memref<2x8x32xf32, #tpu.memory_space<vmem>>, vector<2x8x32xf32>
    tpu.vector_store %arg8[%c0_37, %c0_38, %c0_39], %88 {strides = array<i32>} : memref<2x8x32xf32, #tpu.memory_space<vmem>>, vector<2x8x32xf32>,
    return
  }
  func.func @transform_0(%arg0: i32) -> (i32, i32, i32) {
    %c0_i32 = arith.constant 0 : i32
    %c0_i32_0 = arith.constant 0 : i32
    %c0_i32_1 = arith.constant 0 : i32
    return %arg0, %c0_i32, %c0_i32_0 : i32, i32, i32
  }
  func.func @transform_1(%arg0: i32) -> (i32, i32, i32) {
    %c0_i32 = arith.constant 0 : i32
    %c0_i32_0 = arith.constant 0 : i32
    %c0_i32_1 = arith.constant 0 : i32
    return %arg0, %c0_i32, %c0_i32_0 : i32, i32, i32
  }
  func.func @transform_2(%arg0: i32) -> (i32, i32) {
    %c0_i32 = arith.constant 0 : i32
    %c0_i32_0 = arith.constant 0 : i32
    %c0_i32_1 = arith.constant 0 : i32
    return %c0_i32, %c0_i32_0 : i32, i32
  }
  func.func @transform_3(%arg0: i32) -> (i32, i32) {
    %c0_i32 = arith.constant 0 : i32
    %c0_i32_0 = arith.constant 0 : i32
    %c0_i32_1 = arith.constant 0 : i32
    return %c0_i32, %c0_i32_0 : i32, i32
  }
  func.func @transform_4(%arg0: i32) -> (i32, i32) {
    %c0_i32 = arith.constant 0 : i32
    %c0_i32_0 = arith.constant 0 : i32
    %c0_i32_1 = arith.constant 0 : i32
    return %c0_i32, %c0_i32_0 : i32, i32
  }
  func.func @transform_5(%arg0: i32) -> (i32, i32) {
    %c0_i32 = arith.constant 0 : i32
    %c0_i32_0 = arith.constant 0 : i32
    %c0_i32_1 = arith.constant 0 : i32
    return %c0_i32, %c0_i32_0 : i32, i32
  }
  func.func @transform_6(%arg0: i32) -> (i32, i32) {
    %c0_i32 = arith.constant 0 : i32
    %c0_i32_0 = arith.constant 0 : i32
    %c0_i32_1 = arith.constant 0 : i32
    return %c0_i32, %c0_i32_0 : i32, i32
  }
  func.func @transform_7(%arg0: i32) -> (i32, i32, i32) {
    %c0_i32 = arith.constant 0 : i32
    %c0_i32_0 = arith.constant 0 : i32
    %c0_i32_1 = arith.constant 0 : i32
    return %arg0, %c0_i32, %c0_i32_0 : i32, i32, i32
  }
}

</mosaic_0001>

<llo_original>
// kernel: tpu_custom_call.1
$region0: #{tpu_custom_call.1}
  #allocation0 [shape = 'u32[]', space=smem, size = 0x4, offset = 0x4, fixed_abs, tag = 'smem constant byte address 0x4 - core index']
  #allocation1 [shape = 'u32[144,128]{1,0:T(1,128)}', space=vmem, size = 0x12000, scoped, tag = 'internal scratch']
  %s0 = inlined_call_operand.hbm [shape: f32[2,8,32], index: 0, kind: input, shape index: {}]
  %s1 = inlined_call_operand.hbm [shape: f32[2,16,32], index: 1, kind: input, shape index: {}]
  %s2 = inlined_call_operand.hbm [shape: f32[32,32], index: 2, kind: input, shape index: {}]
  %s3 = inlined_call_operand.hbm [shape: f32[32,32], index: 3, kind: input, shape index: {}]
  %s4 = inlined_call_operand.hbm [shape: f32[32,32], index: 4, kind: input, shape index: {}]
  %s5 = inlined_call_operand.hbm [shape: f32[32,32], index: 5, kind: input, shape index: {}]
  %s6 = inlined_call_operand.vmem [shape: f32[4,32], index: 6, kind: input, shape index: {}]
  %s7 = inlined_call_operand.hbm [shape: f32[2,8,32], index: 7, kind: output, shape index: {}]
  %s8 = sld [smem:[#allocation0]]
  $region62: #{tpu_custom_call.1} parent=0
    _
  %s10 = ssub.s32 1, %s8
  %s11 = scalar_select 0, %s10, %s8
  $region1: #{tpu_custom_call.1} parent=0
    #allocation2 [shape = 'u8[8192]{0}', space=vmem, size = 0x2000, scoped, tag = 'input window, operand 0, single buffered']
    #allocation3 [shape = 's32[1]{0}', space=sflag, size = 0x4, scoped, tag = 'scoped memory for tpu_custom_call.1']
    #allocation4 [shape = 's32[1]{0}', space=sflag, size = 0x4, scoped, tag = 'scoped memory for tpu_custom_call.1']
    #allocation5 [shape = 'u8[16384]{0}', space=vmem, size = 0x4000, scoped, tag = 'input window, operand 1, single buffered']
    #allocation6 [shape = 's32[1]{0}', space=sflag, size = 0x4, scoped, tag = 'scoped memory for tpu_custom_call.1']
    #allocation7 [shape = 'u8[16384]{0}', space=vmem, size = 0x4000, scoped, tag = 'input window, operand 2, single buffered']
    #allocation8 [shape = 'u8[16384]{0}', space=vmem, size = 0x4000, scoped, tag = 'input window, operand 3, single buffered']
    #allocation9 [shape = 's32[1]{0}', space=sflag, size = 0x4, scoped, tag = 'scoped memory for tpu_custom_call.1']
    #allocation10 [shape = 'u8[16384]{0}', space=vmem, size = 0x4000, scoped, tag = 'input window, operand 4, single buffered']
    #allocation11 [shape = 'u8[16384]{0}', space=vmem, size = 0x4000, scoped, tag = 'input window, operand 5, single buffered']
    #allocation12 [shape = 's32[1]{0}', space=sflag, size = 0x4, scoped, tag = 'scoped memory for tpu_custom_call.1']
    #allocation13 [shape = 'u8[8192]{0}', space=vmem, size = 0x2000, scoped, tag = 'output window, operand 0, single buffered']
    %12 = vsyncpa [#allocation3], 0
    %13 = vsyncpa [#allocation6], 0
    %14 = vsyncpa [#allocation9], 0
    %15 = vsyncpa [#allocation12], 0
    %16 = vsyncpa [#allocation4], 0
    // Predicated region
    $region2: #{tpu_custom_call.1} parent=1 // pred_check
      _
    $region3: #{tpu_custom_call.1} parent=1 // pred_check_branch
      %18 = sbr.rel (0) target = $region5
    $region4: #{tpu_custom_call.1} parent=1 // pred_region
      %s20 = ssub.s32 256, 256
      %21 = vsyncadd [#allocation3], %s20
      %s22 = sshll.u32 [#allocation2], 4
      %s23 = int_to_ptr.vmem [resolvable:$true] %s22
      %28 = dma.hbm_to_vmem [thread:$0]  %s0, 256, %s23, [#allocation3], 128, 128, 8
    $region5: #{tpu_custom_call.1} parent=1 // pred_fallthru
      _
    // Predicated region
    $region6: #{tpu_custom_call.1} parent=1 // pred_check
      _
    $region7: #{tpu_custom_call.1} parent=1 // pred_check_branch
      %30 = sbr.rel (0) target = $region9
    $region8: #{tpu_custom_call.1} parent=1 // pred_region
      %s32 = ssub.s32 512, 512
      %33 = vsyncadd [#allocation6], %s32
      %s34 = sshll.u32 [#allocation5], 4
      %s35 = int_to_ptr.vmem [resolvable:$true] %s34
      %40 = dma.hbm_to_vmem [thread:$0]  %s1, 512, %s35, [#allocation6], 128, 128, 8
    $region9: #{tpu_custom_call.1} parent=1 // pred_fallthru
      _
    // Predicated region
    $region10: #{tpu_custom_call.1} parent=1 // pred_check
      _
    $region11: #{tpu_custom_call.1} parent=1 // pred_check_branch
      %42 = sbr.rel (0) target = $region13
    $region12: #{tpu_custom_call.1} parent=1 // pred_region
      %s44 = ssub.s32 512, 512
      %45 = vsyncadd [#allocation6], %s44
      %s46 = sshll.u32 [#allocation7], 4
      %s47 = int_to_ptr.vmem [resolvable:$true] %s46
      %52 = dma.hbm_to_vmem [thread:$0]  %s2, 512, %s47, [#allocation6], 128, 128, 8
    $region13: #{tpu_custom_call.1} parent=1 // pred_fallthru
      _
    // Predicated region
    $region14: #{tpu_custom_call.1} parent=1 // pred_check
      _
    $region15: #{tpu_custom_call.1} parent=1 // pred_check_branch
      %54 = sbr.rel (0) target = $region17
    $region16: #{tpu_custom_call.1} parent=1 // pred_region
      %s56 = ssub.s32 512, 512
      %57 = vsyncadd [#allocation9], %s56
      %s58 = sshll.u32 [#allocation8], 4
      %s59 = int_to_ptr.vmem [resolvable:$true] %s58
      %64 = dma.hbm_to_vmem [thread:$0]  %s3, 512, %s59, [#allocation9], 128, 128, 8
    $region17: #{tpu_custom_call.1} parent=1 // pred_fallthru
      _
    // Predicated region
    $region18: #{tpu_custom_call.1} parent=1 // pred_check
      _
    $region19: #{tpu_custom_call.1} parent=1 // pred_check_branch
      %66 = sbr.rel (0) target = $region21
    $region20: #{tpu_custom_call.1} parent=1 // pred_region
      %s68 = ssub.s32 512, 512
      %69 = vsyncadd [#allocation9], %s68
      %s70 = sshll.u32 [#allocation10], 4
      %s71 = int_to_ptr.vmem [resolvable:$true] %s70
      %76 = dma.hbm_to_vmem [thread:$0]  %s4, 512, %s71, [#allocation9], 128, 128, 8
    $region21: #{tpu_custom_call.1} parent=1 // pred_fallthru
      _
    // Predicated region
    $region22: #{tpu_custom_call.1} parent=1 // pred_check
      _
    $region23: #{tpu_custom_call.1} parent=1 // pred_check_branch
      %78 = sbr.rel (0) target = $region25
    $region24: #{tpu_custom_call.1} parent=1 // pred_region
      %s80 = ssub.s32 512, 512
      %81 = vsyncadd [#allocation12], %s80
      %s82 = sshll.u32 [#allocation11], 4
      %s83 = int_to_ptr.vmem [resolvable:$true] %s82
      %88 = dma.hbm_to_vmem [thread:$0]  %s5, 512, %s83, [#allocation12], 128, 128, 8
    $region25: #{tpu_custom_call.1} parent=1 // pred_fallthru
      _
    // Predicated region
    $region26: #{tpu_custom_call.1} parent=1 // pred_check
      _
    $region27: #{tpu_custom_call.1} parent=1 // pred_check_branch
      %90 = sbr.rel (0) target = $region29
    $region28: #{tpu_custom_call.1} parent=1 // pred_region
      _
    $region29: #{tpu_custom_call.1} parent=1 // pred_fallthru
      _
    // Predicated region
    $region30: #{tpu_custom_call.1} parent=1 // pred_check
      _
    $region31: #{tpu_custom_call.1} parent=1 // pred_check_branch
      %92 = sbr.rel (0) target = $region33
    $region32: #{tpu_custom_call.1} parent=1 // pred_region
      %93 = dma.done [#allocation3], 256
    $region33: #{tpu_custom_call.1} parent=1 // pred_fallthru
      _
    // Predicated region
    $region34: #{tpu_custom_call.1} parent=1 // pred_check
      _
    $region35: #{tpu_custom_call.1} parent=1 // pred_check_branch
      %95 = sbr.rel (0) target = $region37
    $region36: #{tpu_custom_call.1} parent=1 // pred_region
      %96 = dma.done [#allocation6], 512
    $region37: #{tpu_custom_call.1} parent=1 // pred_fallthru
      _
    // Predicated region
    $region38: #{tpu_custom_call.1} parent=1 // pred_check
      _
    $region39: #{tpu_custom_call.1} parent=1 // pred_check_branch
      %98 = sbr.rel (0) target = $region41
    $region40: #{tpu_custom_call.1} parent=1 // pred_region
      %99 = dma.done [#allocation6], 512
    $region41: #{tpu_custom_call.1} parent=1 // pred_fallthru
      _
    // Predicated region
    $region42: #{tpu_custom_call.1} parent=1 // pred_check
      _
    $region43: #{tpu_custom_call.1} parent=1 // pred_check_branch
      %101 = sbr.rel (0) target = $region45
    $region44: #{tpu_custom_call.1} parent=1 // pred_region
      %102 = dma.done [#allocation9], 512
    $region45: #{tpu_custom_call.1} parent=1 // pred_fallthru
      _
    // Predicated region
    $region46: #{tpu_custom_call.1} parent=1 // pred_check
      _
    $region47: #{tpu_custom_call.1} parent=1 // pred_check_branch
      %104 = sbr.rel (0) target = $region49
    $region48: #{tpu_custom_call.1} parent=1 // pred_region
      %105 = dma.done [#allocation9], 512
    $region49: #{tpu_custom_call.1} parent=1 // pred_fallthru
      _
    // Predicated region
    $region50: #{tpu_custom_call.1} parent=1 // pred_check
      _
    $region51: #{tpu_custom_call.1} parent=1 // pred_check_branch
      %107 = sbr.rel (0) target = $region53
    $region52: #{tpu_custom_call.1} parent=1 // pred_region
      %108 = dma.done [#allocation12], 512
    $region53: #{tpu_custom_call.1} parent=1 // pred_fallthru
      _
    %v109 = vld [vmem:[#allocation2] sm:$0xff]
    %v110 = vld [vmem:[#allocation2 + $0x8] sm:$0xff]
    %v111 = vld [vmem:[#allocation5] sm:$0xff]
    %v112 = vld [vmem:[#allocation5 + $0x8] sm:$0xff]
    %v113 = vld [vmem:[#allocation5 + $0x10] sm:$0xff]
    %v114 = vld [vmem:[#allocation5 + $0x18] sm:$0xff]
    %v115 = vld [vmem:[%s6] sm:$0x1]
    %v116 = vld [vmem:[%s6 + $0x1] sm:$0x1]
    %v117 = vld [vmem:[%s6 + $0x2] sm:$0x1]
    %v118 = vld [vmem:[%s6 + $0x3] sm:$0x1]
    %v119 = vld [vmem:[#allocation7] sm:$0xff]
    %v120 = vld [vmem:[#allocation7 + $0x8] sm:$0xff]
    %v121 = vld [vmem:[#allocation7 + $0x10] sm:$0xff]
    %v122 = vld [vmem:[#allocation7 + $0x18] sm:$0xff]
    %v123 = vlaneseq
    %v124 = vshrl.u32 %v123, 7
    %v125 = vsub.s32 0, %v124
    %v126 = vrot.slane %v115, %v125
    %vm127 = vcmask 261120
    %v129 = vsel %vm127, %v109, 0
    %v132 = vsel %vm127, %v110, 0
    %134 = vmatprep.subr.mxu0 0.0
    %135 = vmatpush1.msra.mxu0 0.0
    %136 = vmatprep.subr.mxu0 0.0
    %137 = vmatpush1.msra.mxu0 0.0
    %138 = vmatprep.subr.mxu0 0.0
    %139 = vmatpush1.msra.mxu0 0.0
    %140 = vmatprep.subr.mxu0 0.0
    %141 = vmatpush1.msra.mxu0 0.0
    %142 = vmatprep.subr.mxu0 0.0
    %143 = vmatpush1.msra.mxu0 0.0
    %144 = vmatprep.subr.mxu0 0.0
    %145 = vmatpush1.msra.mxu0 0.0
    %146 = vmatprep.subr.mxu0 0.0
    %147 = vmatpush1.msra.mxu0 0.0
    %148 = vmatprep.subr.mxu0 0.0
    %149 = vmatpush1.msra.mxu0 0.0
    %150 = vmatprep.subr.mxu0 0.0
    %151 = vmatpush1.msra.mxu0 0.0
    %152 = vmatprep.subr.mxu0 0.0
    %153 = vmatpush1.msra.mxu0 0.0
    %154 = vmatprep.subr.mxu0 0.0
    %155 = vmatpush1.msra.mxu0 0.0
    %156 = vmatprep.subr.mxu0 0.0
    %157 = vmatpush1.msra.mxu0 0.0
    %158 = vmatprep.subr.mxu0 0.0
    %159 = vmatpush1.msra.mxu0 %v122
    %160 = vmatprep.subr.mxu0 0.0
    %161 = vmatpush1.msra.mxu0 %v121
    %162 = vmatprep.subr.mxu0 0.0
    %163 = vmatpush1.msra.mxu0 %v120
    %164 = vmatprep.subr.mxu0 0.0
    %165 = vmatpush1.msra.mxu0 %v119
    %166 = vmatprep.subr.mxu0 0.0
    %167 = vmatpush2.msra.mxu0 0.0
    %168 = vmatprep.subr.mxu0 0.0
    %169 = vmatpush2.msra.mxu0 0.0
    %170 = vmatprep.subr.mxu0 0.0
    %171 = vmatpush2.msra.mxu0 0.0
    %172 = vmatprep.subr.mxu0 0.0
    %173 = vmatpush2.msra.mxu0 0.0
    %174 = vmatprep.subr.mxu0 0.0
    %175 = vmatpush2.msra.mxu0 0.0
    %176 = vmatprep.subr.mxu0 0.0
    %177 = vmatpush2.msra.mxu0 0.0
    %178 = vmatprep.subr.mxu0 0.0
    %179 = vmatpush2.msra.mxu0 0.0
    %180 = vmatprep.subr.mxu0 0.0
    %181 = vmatpush2.msra.mxu0 0.0
    %182 = vmatprep.subr.mxu0 0.0
    %183 = vmatpush2.msra.mxu0 0.0
    %184 = vmatprep.subr.mxu0 0.0
    %185 = vmatpush2.msra.mxu0 0.0
    %186 = vmatprep.subr.mxu0 0.0
    %187 = vmatpush2.msra.mxu0 0.0
    %188 = vmatprep.subr.mxu0 0.0
    %189 = vmatpush2.msra.mxu0 0.0
    %190 = vmatprep.subr.mxu0 0.0
    %191 = vmatpush2.msra.mxu0 0.0
    %192 = vmatprep.subr.mxu0 0.0
    %193 = vmatpush2.msra.mxu0 0.0
    %194 = vmatprep.subr.mxu0 0.0
    %195 = vmatpush2.msra.mxu0 0.0
    %196 = vmatprep.subr.mxu0 0.0
    %197 = vmatpush2.msra.mxu0 0.0
    %198 = vmatprep.mubr.f32.mxu0 0.0
    %199 = vmatmul.mubr.f32.gmra.mxu0 %v129
    %v200 = vpop.f32.mrf.mxu0
    %v201 = vadd.f32 %v126, %v200
    %v202 = vpop.f32.mrf.mxu0
    %203 = vmatprep.mubr.f32.mxu0 0.0
    %204 = vmatmul.mubr.f32.gmra.mxu0 %v132
    %v205 = vpop.f32.mrf.mxu0
    %v206 = vadd.f32 %v126, %v205
    %v207 = vpop.f32.mrf.mxu0
    %208 = vdwg.mxu0
    %v209 = vld [vmem:[#allocation8] sm:$0xff]
    %v210 = vld [vmem:[#allocation8 + $0x8] sm:$0xff]
    %v211 = vld [vmem:[#allocation8 + $0x10] sm:$0xff]
    %v212 = vld [vmem:[#allocation8 + $0x18] sm:$0xff]
    %v213 = vlaneseq
    %v214 = vshrl.u32 %v213, 7
    %v215 = vsub.s32 0, %v214
    %v216 = vrot.slane %v116, %v215
    %v218 = vsel %vm127, %v111, 0
    %v221 = vsel %vm127, %v112, 0
    %v224 = vsel %vm127, %v113, 0
    %v227 = vsel %vm127, %v114, 0
    %229 = vmatprep.subr.mxu0 0.0
    %230 = vmatpush1.msra.mxu0 0.0
    %231 = vmatprep.subr.mxu0 0.0
    %232 = vmatpush1.msra.mxu0 0.0
    %233 = vmatprep.subr.mxu0 0.0
    %234 = vmatpush1.msra.mxu0 0.0
    %235 = vmatprep.subr.mxu0 0.0
    %236 = vmatpush1.msra.mxu0 0.0
    %237 = vmatprep.subr.mxu0 0.0
    %238 = vmatpush1.msra.mxu0 0.0
    %239 = vmatprep.subr.mxu0 0.0
    %240 = vmatpush1.msra.mxu0 0.0
    %241 = vmatprep.subr.mxu0 0.0
    %242 = vmatpush1.msra.mxu0 0.0
    %243 = vmatprep.subr.mxu0 0.0
    %244 = vmatpush1.msra.mxu0 0.0
    %245 = vmatprep.subr.mxu0 0.0
    %246 = vmatpush1.msra.mxu0 0.0
    %247 = vmatprep.subr.mxu0 0.0
    %248 = vmatpush1.msra.mxu0 0.0
    %249 = vmatprep.subr.mxu0 0.0
    %250 = vmatpush1.msra.mxu0 0.0
    %251 = vmatprep.subr.mxu0 0.0
    %252 = vmatpush1.msra.mxu0 0.0
    %253 = vmatprep.subr.mxu0 0.0
    %254 = vmatpush1.msra.mxu0 %v212
    %255 = vmatprep.subr.mxu0 0.0
    %256 = vmatpush1.msra.mxu0 %v211
    %257 = vmatprep.subr.mxu0 0.0
    %258 = vmatpush1.msra.mxu0 %v210
    %259 = vmatprep.subr.mxu0 0.0
    %260 = vmatpush1.msra.mxu0 %v209
    %261 = vmatprep.subr.mxu0 0.0
    %262 = vmatpush2.msra.mxu0 0.0
    %263 = vmatprep.subr.mxu0 0.0
    %264 = vmatpush2.msra.mxu0 0.0
    %265 = vmatprep.subr.mxu0 0.0
    %266 = vmatpush2.msra.mxu0 0.0
    %267 = vmatprep.subr.mxu0 0.0
    %268 = vmatpush2.msra.mxu0 0.0
    %269 = vmatprep.subr.mxu0 0.0
    %270 = vmatpush2.msra.mxu0 0.0
    %271 = vmatprep.subr.mxu0 0.0
    %272 = vmatpush2.msra.mxu0 0.0
    %273 = vmatprep.subr.mxu0 0.0
    %274 = vmatpush2.msra.mxu0 0.0
    %275 = vmatprep.subr.mxu0 0.0
    %276 = vmatpush2.msra.mxu0 0.0
    %277 = vmatprep.subr.mxu0 0.0
    %278 = vmatpush2.msra.mxu0 0.0
    %279 = vmatprep.subr.mxu0 0.0
    %280 = vmatpush2.msra.mxu0 0.0
    %281 = vmatprep.subr.mxu0 0.0
    %282 = vmatpush2.msra.mxu0 0.0
    %283 = vmatprep.subr.mxu0 0.0
    %284 = vmatpush2.msra.mxu0 0.0
    %285 = vmatprep.subr.mxu0 0.0
    %286 = vmatpush2.msra.mxu0 0.0
    %287 = vmatprep.subr.mxu0 0.0
    %288 = vmatpush2.msra.mxu0 0.0
    %289 = vmatprep.subr.mxu0 0.0
    %290 = vmatpush2.msra.mxu0 0.0
    %291 = vmatprep.subr.mxu0 0.0
    %292 = vmatpush2.msra.mxu0 0.0
    %293 = vmatprep.mubr.f32.mxu0 0.0
    %294 = vmatmul.mubr.f32.gmra.mxu0 %v218
    %v295 = vpop.f32.mrf.mxu0
    %v296 = vadd.f32 %v216, %v295
    %v297 = vpop.f32.mrf.mxu0
    %298 = vmatprep.mubr.f32.mxu0 0.0
    %299 = vmatmul.mubr.f32.gmra.mxu0 %v221
    %v300 = vpop.f32.mrf.mxu0
    %v301 = vadd.f32 %v216, %v300
    %v302 = vpop.f32.mrf.mxu0
    %303 = vmatprep.mubr.f32.mxu0 0.0
    %304 = vmatmul.mubr.f32.gmra.mxu0 %v224
    %v305 = vpop.f32.mrf.mxu0
    %v306 = vadd.f32 %v216, %v305
    %v307 = vpop.f32.mrf.mxu0
    %308 = vmatprep.mubr.f32.mxu0 0.0
    %309 = vmatmul.mubr.f32.gmra.mxu0 %v227
    %v310 = vpop.f32.mrf.mxu0
    %v311 = vadd.f32 %v216, %v310
    %v312 = vpop.f32.mrf.mxu0
    %313 = vdwg.mxu0
    %v314 = vld [vmem:[#allocation10] sm:$0xff]
    %v315 = vld [vmem:[#allocation10 + $0x8] sm:$0xff]
    %v316 = vld [vmem:[#allocation10 + $0x10] sm:$0xff]
    %v317 = vld [vmem:[#allocation10 + $0x18] sm:$0xff]
    %v318 = vlaneseq
    %v319 = vshrl.u32 %v318, 7
    %v320 = vsub.s32 0, %v319
    %v321 = vrot.slane %v117, %v320
    %322 = vmatprep.subr.mxu0 0.0
    %323 = vmatpush1.msra.mxu0 0.0
    %324 = vmatprep.subr.mxu0 0.0
    %325 = vmatpush1.msra.mxu0 0.0
    %326 = vmatprep.subr.mxu0 0.0
    %327 = vmatpush1.msra.mxu0 0.0
    %328 = vmatprep.subr.mxu0 0.0
    %329 = vmatpush1.msra.mxu0 0.0
    %330 = vmatprep.subr.mxu0 0.0
    %331 = vmatpush1.msra.mxu0 0.0
    %332 = vmatprep.subr.mxu0 0.0
    %333 = vmatpush1.msra.mxu0 0.0
    %334 = vmatprep.subr.mxu0 0.0
    %335 = vmatpush1.msra.mxu0 0.0
    %336 = vmatprep.subr.mxu0 0.0
    %337 = vmatpush1.msra.mxu0 0.0
    %338 = vmatprep.subr.mxu0 0.0
    %339 = vmatpush1.msra.mxu0 0.0
    %340 = vmatprep.subr.mxu0 0.0
    %341 = vmatpush1.msra.mxu0 0.0
    %342 = vmatprep.subr.mxu0 0.0
    %343 = vmatpush1.msra.mxu0 0.0
    %344 = vmatprep.subr.mxu0 0.0
    %345 = vmatpush1.msra.mxu0 0.0
    %346 = vmatprep.subr.mxu0 0.0
    %347 = vmatpush1.msra.mxu0 %v317
    %348 = vmatprep.subr.mxu0 0.0
    %349 = vmatpush1.msra.mxu0 %v316
    %350 = vmatprep.subr.mxu0 0.0
    %351 = vmatpush1.msra.mxu0 %v315
    %352 = vmatprep.subr.mxu0 0.0
    %353 = vmatpush1.msra.mxu0 %v314
    %354 = vmatprep.subr.mxu0 0.0
    %355 = vmatpush2.msra.mxu0 0.0
    %356 = vmatprep.subr.mxu0 0.0
    %357 = vmatpush2.msra.mxu0 0.0
    %358 = vmatprep.subr.mxu0 0.0
    %359 = vmatpush2.msra.mxu0 0.0
    %360 = vmatprep.subr.mxu0 0.0
    %361 = vmatpush2.msra.mxu0 0.0
    %362 = vmatprep.subr.mxu0 0.0
    %363 = vmatpush2.msra.mxu0 0.0
    %364 = vmatprep.subr.mxu0 0.0
    %365 = vmatpush2.msra.mxu0 0.0
    %366 = vmatprep.subr.mxu0 0.0
    %367 = vmatpush2.msra.mxu0 0.0
    %368 = vmatprep.subr.mxu0 0.0
    %369 = vmatpush2.msra.mxu0 0.0
    %370 = vmatprep.subr.mxu0 0.0
    %371 = vmatpush2.msra.mxu0 0.0
    %372 = vmatprep.subr.mxu0 0.0
    %373 = vmatpush2.msra.mxu0 0.0
    %374 = vmatprep.subr.mxu0 0.0
    %375 = vmatpush2.msra.mxu0 0.0
    %376 = vmatprep.subr.mxu0 0.0
    %377 = vmatpush2.msra.mxu0 0.0
    %378 = vmatprep.subr.mxu0 0.0
    %379 = vmatpush2.msra.mxu0 0.0
    %380 = vmatprep.subr.mxu0 0.0
    %381 = vmatpush2.msra.mxu0 0.0
    %382 = vmatprep.subr.mxu0 0.0
    %383 = vmatpush2.msra.mxu0 0.0
    %384 = vmatprep.subr.mxu0 0.0
    %385 = vmatpush2.msra.mxu0 0.0
    %386 = vmatprep.mubr.f32.mxu0 0.0
    %387 = vmatmul.mubr.f32.gmra.mxu0 %v218
    %v388 = vpop.f32.mrf.mxu0
    %v389 = vadd.f32 %v321, %v388
    %v390 = vpop.f32.mrf.mxu0
    %391 = vmatprep.mubr.f32.mxu0 0.0
    %392 = vmatmul.mubr.f32.gmra.mxu0 %v221
    %v393 = vpop.f32.mrf.mxu0
    %v394 = vadd.f32 %v321, %v393
    %v395 = vpop.f32.mrf.mxu0
    %396 = vmatprep.mubr.f32.mxu0 0.0
    %397 = vmatmul.mubr.f32.gmra.mxu0 %v224
    %v398 = vpop.f32.mrf.mxu0
    %v399 = vadd.f32 %v321, %v398
    %v400 = vpop.f32.mrf.mxu0
    %401 = vmatprep.mubr.f32.mxu0 0.0
    %402 = vmatmul.mubr.f32.gmra.mxu0 %v227
    %v403 = vpop.f32.mrf.mxu0
    %v404 = vadd.f32 %v321, %v403
    %v405 = vpop.f32.mrf.mxu0
    %406 = vdwg.mxu0
    %vm407 = vcmask 64512
    %v409 = vsel %vm407, %v201, 0
    %v412 = vsel %vm407, %v296, 0
    %v415 = vsel %vm407, %v301, 0
    %417 = vmatprep.subr.mxu0 0.0
    %418 = vmatpush1.xpose.msra.mxu0 0.0
    %419 = vmatprep.subr.mxu0 0.0
    %420 = vmatpush1.xpose.msra.mxu0 0.0
    %421 = vmatprep.subr.mxu0 0.0
    %422 = vmatpush1.xpose.msra.mxu0 0.0
    %423 = vmatprep.subr.mxu0 0.0
    %424 = vmatpush1.xpose.msra.mxu0 0.0
    %425 = vmatprep.subr.mxu0 0.0
    %426 = vmatpush1.xpose.msra.mxu0 0.0
    %427 = vmatprep.subr.mxu0 0.0
    %428 = vmatpush1.xpose.msra.mxu0 0.0
    %429 = vmatprep.subr.mxu0 0.0
    %430 = vmatpush1.xpose.msra.mxu0 0.0
    %431 = vmatprep.subr.mxu0 0.0
    %432 = vmatpush1.xpose.msra.mxu0 0.0
    %433 = vmatprep.subr.mxu0 0.0
    %434 = vmatpush1.xpose.msra.mxu0 0.0
    %435 = vmatprep.subr.mxu0 0.0
    %436 = vmatpush1.xpose.msra.mxu0 0.0
    %437 = vmatprep.subr.mxu0 0.0
    %438 = vmatpush1.xpose.msra.mxu0 0.0
    %439 = vmatprep.subr.mxu0 0.0
    %440 = vmatpush1.xpose.msra.mxu0 0.0
    %441 = vmatprep.subr.mxu0 0.0
    %442 = vmatpush1.xpose.msra.mxu0 0.0
    %443 = vmatprep.subr.mxu0 0.0
    %444 = vmatpush1.xpose.msra.mxu0 0.0
    %445 = vmatprep.subr.mxu0 0.0
    %446 = vmatpush1.xpose.msra.mxu0 %v415
    %447 = vmatprep.subr.mxu0 0.0
    %448 = vmatpush1.xpose.msra.mxu0 %v412
    %449 = vmatprep.subr.mxu0 0.0
    %450 = vmatpush2.xpose.msra.mxu0 0.0
    %451 = vmatprep.subr.mxu0 0.0
    %452 = vmatpush2.xpose.msra.mxu0 0.0
    %453 = vmatprep.subr.mxu0 0.0
    %454 = vmatpush2.xpose.msra.mxu0 0.0
    %455 = vmatprep.subr.mxu0 0.0
    %456 = vmatpush2.xpose.msra.mxu0 0.0
    %457 = vmatprep.subr.mxu0 0.0
    %458 = vmatpush2.xpose.msra.mxu0 0.0
    %459 = vmatprep.subr.mxu0 0.0
    %460 = vmatpush2.xpose.msra.mxu0 0.0
    %461 = vmatprep.subr.mxu0 0.0
    %462 = vmatpush2.xpose.msra.mxu0 0.0
    %463 = vmatprep.subr.mxu0 0.0
    %464 = vmatpush2.xpose.msra.mxu0 0.0
    %465 = vmatprep.subr.mxu0 0.0
    %466 = vmatpush2.xpose.msra.mxu0 0.0
    %467 = vmatprep.subr.mxu0 0.0
    %468 = vmatpush2.xpose.msra.mxu0 0.0
    %469 = vmatprep.subr.mxu0 0.0
    %470 = vmatpush2.xpose.msra.mxu0 0.0
    %471 = vmatprep.subr.mxu0 0.0
    %472 = vmatpush2.xpose.msra.mxu0 0.0
    %473 = vmatprep.subr.mxu0 0.0
    %474 = vmatpush2.xpose.msra.mxu0 0.0
    %475 = vmatprep.subr.mxu0 0.0
    %476 = vmatpush2.xpose.msra.mxu0 0.0
    %477 = vmatprep.subr.mxu0 0.0
    %478 = vmatpush2.xpose.msra.mxu0 0.0
    %479 = vmatprep.subr.mxu0 0.0
    %480 = vmatpush2.xpose.msra.mxu0 0.0
    %481 = vmatprep.mubr.f32.mxu0 0.0
    %482 = vmatmul.mubr.f32.gmra.mxu0 %v409
    %v483 = vpop.f32.mrf.mxu0
    %v484 = vadd.f32 0.0, %v483
    %v485 = vpop.f32.mrf.mxu0
    %486 = vdwg.mxu0
    %v488 = vsel %vm407, %v206, 0
    %v491 = vsel %vm407, %v306, 0
    %v494 = vsel %vm407, %v311, 0
    %496 = vmatprep.subr.mxu0 0.0
    %497 = vmatpush1.xpose.msra.mxu0 0.0
    %498 = vmatprep.subr.mxu0 0.0
    %499 = vmatpush1.xpose.msra.mxu0 0.0
    %500 = vmatprep.subr.mxu0 0.0
    %501 = vmatpush1.xpose.msra.mxu0 0.0
    %502 = vmatprep.subr.mxu0 0.0
    %503 = vmatpush1.xpose.msra.mxu0 0.0
    %504 = vmatprep.subr.mxu0 0.0
    %505 = vmatpush1.xpose.msra.mxu0 0.0
    %506 = vmatprep.subr.mxu0 0.0
    %507 = vmatpush1.xpose.msra.mxu0 0.0
    %508 = vmatprep.subr.mxu0 0.0
    %509 = vmatpush1.xpose.msra.mxu0 0.0
    %510 = vmatprep.subr.mxu0 0.0
    %511 = vmatpush1.xpose.msra.mxu0 0.0
    %512 = vmatprep.subr.mxu0 0.0
    %513 = vmatpush1.xpose.msra.mxu0 0.0
    %514 = vmatprep.subr.mxu0 0.0
    %515 = vmatpush1.xpose.msra.mxu0 0.0
    %516 = vmatprep.subr.mxu0 0.0
    %517 = vmatpush1.xpose.msra.mxu0 0.0
    %518 = vmatprep.subr.mxu0 0.0
    %519 = vmatpush1.xpose.msra.mxu0 0.0
    %520 = vmatprep.subr.mxu0 0.0
    %521 = vmatpush1.xpose.msra.mxu0 0.0
    %522 = vmatprep.subr.mxu0 0.0
    %523 = vmatpush1.xpose.msra.mxu0 0.0
    %524 = vmatprep.subr.mxu0 0.0
    %525 = vmatpush1.xpose.msra.mxu0 %v494
    %526 = vmatprep.subr.mxu0 0.0
    %527 = vmatpush1.xpose.msra.mxu0 %v491
    %528 = vmatprep.subr.mxu0 0.0
    %529 = vmatpush2.xpose.msra.mxu0 0.0
    %530 = vmatprep.subr.mxu0 0.0
    %531 = vmatpush2.xpose.msra.mxu0 0.0
    %532 = vmatprep.subr.mxu0 0.0
    %533 = vmatpush2.xpose.msra.mxu0 0.0
    %534 = vmatprep.subr.mxu0 0.0
    %535 = vmatpush2.xpose.msra.mxu0 0.0
    %536 = vmatprep.subr.mxu0 0.0
    %537 = vmatpush2.xpose.msra.mxu0 0.0
    %538 = vmatprep.subr.mxu0 0.0
    %539 = vmatpush2.xpose.msra.mxu0 0.0
    %540 = vmatprep.subr.mxu0 0.0
    %541 = vmatpush2.xpose.msra.mxu0 0.0
    %542 = vmatprep.subr.mxu0 0.0
    %543 = vmatpush2.xpose.msra.mxu0 0.0
    %544 = vmatprep.subr.mxu0 0.0
    %545 = vmatpush2.xpose.msra.mxu0 0.0
    %546 = vmatprep.subr.mxu0 0.0
    %547 = vmatpush2.xpose.msra.mxu0 0.0
    %548 = vmatprep.subr.mxu0 0.0
    %549 = vmatpush2.xpose.msra.mxu0 0.0
    %550 = vmatprep.subr.mxu0 0.0
    %551 = vmatpush2.xpose.msra.mxu0 0.0
    %552 = vmatprep.subr.mxu0 0.0
    %553 = vmatpush2.xpose.msra.mxu0 0.0
    %554 = vmatprep.subr.mxu0 0.0
    %555 = vmatpush2.xpose.msra.mxu0 0.0
    %556 = vmatprep.subr.mxu0 0.0
    %557 = vmatpush2.xpose.msra.mxu0 0.0
    %558 = vmatprep.subr.mxu0 0.0
    %559 = vmatpush2.xpose.msra.mxu0 0.0
    %560 = vmatprep.mubr.f32.mxu0 0.0
    %561 = vmatmul.mubr.f32.gmra.mxu0 %v488
    %v562 = vpop.f32.mrf.mxu0
    %v563 = vadd.f32 0.0, %v562
    %v564 = vpop.f32.mrf.mxu0
    %565 = vdwg.mxu0
    %vm566 = vcmask 130048
    %v567 = vsel %vm566, %v484, -inf
    %568 = vmax.xlane.f32.xlu0 %v567
    %v569 = vpop.xlane.xlu0 %568
    %v570 = vsel %vm566, %v563, -inf
    %571 = vmax.xlane.f32.xlu0 %v570
    %v572 = vpop.xlane.xlu0 %571
    %v573 = vsub.f32 %v484, %v569
    %v574 = vsub.f32 %v563, %v572
    %v575 = vmul.f32 %v573, 1.442695
    %v576 = vpow.pop %v575
    %v577 = vmul.f32 %v574, 1.442695
    %v578 = vpow.pop %v577
    %v579 = vsel %vm566, %v576, 0.0
    %580 = vadd.xlane.f32.xlu0 %v579
    %v581 = vpop.xlane.xlu0 %580
    %v582 = vsel %vm566, %v578, 0.0
    %583 = vadd.xlane.f32.xlu0 %v582
    %v584 = vpop.xlane.xlu0 %583
    %v585 = vrcp.pop %v581
    %v586 = vmul.f32 %v576, %v585
    %v587 = vrcp.pop %v584
    %v588 = vmul.f32 %v578, %v587
    %v590 = vsel %vm566, %v586, 0
    %592 = vmatprep.subr.mxu0 0.0
    %593 = vmatpush1.msra.mxu0 0.0
    %594 = vmatprep.subr.mxu0 0.0
    %595 = vmatpush1.msra.mxu0 0.0
    %596 = vmatprep.subr.mxu0 0.0
    %597 = vmatpush1.msra.mxu0 0.0
    %598 = vmatprep.subr.mxu0 0.0
    %599 = vmatpush1.msra.mxu0 0.0
    %600 = vmatprep.subr.mxu0 0.0
    %601 = vmatpush1.msra.mxu0 0.0
    %602 = vmatprep.subr.mxu0 0.0
    %603 = vmatpush1.msra.mxu0 0.0
    %604 = vmatprep.subr.mxu0 0.0
    %605 = vmatpush1.msra.mxu0 0.0
    %606 = vmatprep.subr.mxu0 0.0
    %607 = vmatpush1.msra.mxu0 0.0
    %608 = vmatprep.subr.mxu0 0.0
    %609 = vmatpush1.msra.mxu0 0.0
    %610 = vmatprep.subr.mxu0 0.0
    %611 = vmatpush1.msra.mxu0 0.0
    %612 = vmatprep.subr.mxu0 0.0
    %613 = vmatpush1.msra.mxu0 0.0
    %614 = vmatprep.subr.mxu0 0.0
    %615 = vmatpush1.msra.mxu0 0.0
    %616 = vmatprep.subr.mxu0 0.0
    %617 = vmatpush1.msra.mxu0 0.0
    %618 = vmatprep.subr.mxu0 0.0
    %619 = vmatpush1.msra.mxu0 0.0
    %620 = vmatprep.subr.mxu0 0.0
    %621 = vmatpush1.msra.mxu0 %v394
    %622 = vmatprep.subr.mxu0 0.0
    %623 = vmatpush1.msra.mxu0 %v389
    %624 = vmatprep.subr.mxu0 0.0
    %625 = vmatpush2.msra.mxu0 0.0
    %626 = vmatprep.subr.mxu0 0.0
    %627 = vmatpush2.msra.mxu0 0.0
    %628 = vmatprep.subr.mxu0 0.0
    %629 = vmatpush2.msra.mxu0 0.0
    %630 = vmatprep.subr.mxu0 0.0
    %631 = vmatpush2.msra.mxu0 0.0
    %632 = vmatprep.subr.mxu0 0.0
    %633 = vmatpush2.msra.mxu0 0.0
    %634 = vmatprep.subr.mxu0 0.0
    %635 = vmatpush2.msra.mxu0 0.0
    %636 = vmatprep.subr.mxu0 0.0
    %637 = vmatpush2.msra.mxu0 0.0
    %638 = vmatprep.subr.mxu0 0.0
    %639 = vmatpush2.msra.mxu0 0.0
    %640 = vmatprep.subr.mxu0 0.0
    %641 = vmatpush2.msra.mxu0 0.0
    %642 = vmatprep.subr.mxu0 0.0
    %643 = vmatpush2.msra.mxu0 0.0
    %644 = vmatprep.subr.mxu0 0.0
    %645 = vmatpush2.msra.mxu0 0.0
    %646 = vmatprep.subr.mxu0 0.0
    %647 = vmatpush2.msra.mxu0 0.0
    %648 = vmatprep.subr.mxu0 0.0
    %649 = vmatpush2.msra.mxu0 0.0
    %650 = vmatprep.subr.mxu0 0.0
    %651 = vmatpush2.msra.mxu0 0.0
    %652 = vmatprep.subr.mxu0 0.0
    %653 = vmatpush2.msra.mxu0 0.0
    %654 = vmatprep.subr.mxu0 0.0
    %655 = vmatpush2.msra.mxu0 0.0
    %656 = vmatprep.mubr.f32.mxu0 0.0
    %657 = vmatmul.mubr.f32.gmra.mxu0 %v590
    %v658 = vpop.f32.mrf.mxu0
    %v659 = vadd.f32 0.0, %v658
    %v660 = vpop.f32.mrf.mxu0
    %661 = vdwg.mxu0
    %v663 = vsel %vm566, %v588, 0
    %665 = vmatprep.subr.mxu0 0.0
    %666 = vmatpush1.msra.mxu0 0.0
    %667 = vmatprep.subr.mxu0 0.0
    %668 = vmatpush1.msra.mxu0 0.0
    %669 = vmatprep.subr.mxu0 0.0
    %670 = vmatpush1.msra.mxu0 0.0
    %671 = vmatprep.subr.mxu0 0.0
    %672 = vmatpush1.msra.mxu0 0.0
    %673 = vmatprep.subr.mxu0 0.0
    %674 = vmatpush1.msra.mxu0 0.0
    %675 = vmatprep.subr.mxu0 0.0
    %676 = vmatpush1.msra.mxu0 0.0
    %677 = vmatprep.subr.mxu0 0.0
    %678 = vmatpush1.msra.mxu0 0.0
    %679 = vmatprep.subr.mxu0 0.0
    %680 = vmatpush1.msra.mxu0 0.0
    %681 = vmatprep.subr.mxu0 0.0
    %682 = vmatpush1.msra.mxu0 0.0
    %683 = vmatprep.subr.mxu0 0.0
    %684 = vmatpush1.msra.mxu0 0.0
    %685 = vmatprep.subr.mxu0 0.0
    %686 = vmatpush1.msra.mxu0 0.0
    %687 = vmatprep.subr.mxu0 0.0
    %688 = vmatpush1.msra.mxu0 0.0
    %689 = vmatprep.subr.mxu0 0.0
    %690 = vmatpush1.msra.mxu0 0.0
    %691 = vmatprep.subr.mxu0 0.0
    %692 = vmatpush1.msra.mxu0 0.0
    %693 = vmatprep.subr.mxu0 0.0
    %694 = vmatpush1.msra.mxu0 %v404
    %695 = vmatprep.subr.mxu0 0.0
    %696 = vmatpush1.msra.mxu0 %v399
    %697 = vmatprep.subr.mxu0 0.0
    %698 = vmatpush2.msra.mxu0 0.0
    %699 = vmatprep.subr.mxu0 0.0
    %700 = vmatpush2.msra.mxu0 0.0
    %701 = vmatprep.subr.mxu0 0.0
    %702 = vmatpush2.msra.mxu0 0.0
    %703 = vmatprep.subr.mxu0 0.0
    %704 = vmatpush2.msra.mxu0 0.0
    %705 = vmatprep.subr.mxu0 0.0
    %706 = vmatpush2.msra.mxu0 0.0
    %707 = vmatprep.subr.mxu0 0.0
    %708 = vmatpush2.msra.mxu0 0.0
    %709 = vmatprep.subr.mxu0 0.0
    %710 = vmatpush2.msra.mxu0 0.0
    %711 = vmatprep.subr.mxu0 0.0
    %712 = vmatpush2.msra.mxu0 0.0
    %713 = vmatprep.subr.mxu0 0.0
    %714 = vmatpush2.msra.mxu0 0.0
    %715 = vmatprep.subr.mxu0 0.0
    %716 = vmatpush2.msra.mxu0 0.0
    %717 = vmatprep.subr.mxu0 0.0
    %718 = vmatpush2.msra.mxu0 0.0
    %719 = vmatprep.subr.mxu0 0.0
    %720 = vmatpush2.msra.mxu0 0.0
    %721 = vmatprep.subr.mxu0 0.0
    %722 = vmatpush2.msra.mxu0 0.0
    %723 = vmatprep.subr.mxu0 0.0
    %724 = vmatpush2.msra.mxu0 0.0
    %725 = vmatprep.subr.mxu0 0.0
    %726 = vmatpush2.msra.mxu0 0.0
    %727 = vmatprep.subr.mxu0 0.0
    %728 = vmatpush2.msra.mxu0 0.0
    %729 = vmatprep.mubr.f32.mxu0 0.0
    %730 = vmatmul.mubr.f32.gmra.mxu0 %v663
    %v731 = vpop.f32.mrf.mxu0
    %v732 = vadd.f32 0.0, %v731
    %v733 = vpop.f32.mrf.mxu0
    %734 = vdwg.mxu0
    %735 = vrot.lane.b32.xlu0 %v201, 120
    %v736 = vpop.permute.xlu0 %735
    %737 = vrot.lane.b32.xlu0 %v296, 120
    %v738 = vpop.permute.xlu0 %737
    %739 = vrot.lane.b32.xlu0 %v301, 120
    %v740 = vpop.permute.xlu0 %739
    %v741 = vsel %vm407, %v736, 0
    %v743 = vsel %vm407, %v738, 0
    %v745 = vsel %vm407, %v740, 0
    %747 = vmatprep.subr.mxu0 0.0
    %748 = vmatpush1.xpose.msra.mxu0 0.0
    %749 = vmatprep.subr.mxu0 0.0
    %750 = vmatpush1.xpose.msra.mxu0 0.0
    %751 = vmatprep.subr.mxu0 0.0
    %752 = vmatpush1.xpose.msra.mxu0 0.0
    %753 = vmatprep.subr.mxu0 0.0
    %754 = vmatpush1.xpose.msra.mxu0 0.0
    %755 = vmatprep.subr.mxu0 0.0
    %756 = vmatpush1.xpose.msra.mxu0 0.0
    %757 = vmatprep.subr.mxu0 0.0
    %758 = vmatpush1.xpose.msra.mxu0 0.0
    %759 = vmatprep.subr.mxu0 0.0
    %760 = vmatpush1.xpose.msra.mxu0 0.0
    %761 = vmatprep.subr.mxu0 0.0
    %762 = vmatpush1.xpose.msra.mxu0 0.0
    %763 = vmatprep.subr.mxu0 0.0
    %764 = vmatpush1.xpose.msra.mxu0 0.0
    %765 = vmatprep.subr.mxu0 0.0
    %766 = vmatpush1.xpose.msra.mxu0 0.0
    %767 = vmatprep.subr.mxu0 0.0
    %768 = vmatpush1.xpose.msra.mxu0 0.0
    %769 = vmatprep.subr.mxu0 0.0
    %770 = vmatpush1.xpose.msra.mxu0 0.0
    %771 = vmatprep.subr.mxu0 0.0
    %772 = vmatpush1.xpose.msra.mxu0 0.0
    %773 = vmatprep.subr.mxu0 0.0
    %774 = vmatpush1.xpose.msra.mxu0 0.0
    %775 = vmatprep.subr.mxu0 0.0
    %776 = vmatpush1.xpose.msra.mxu0 %v745
    %777 = vmatprep.subr.mxu0 0.0
    %778 = vmatpush1.xpose.msra.mxu0 %v743
    %779 = vmatprep.subr.mxu0 0.0
    %780 = vmatpush2.xpose.msra.mxu0 0.0
    %781 = vmatprep.subr.mxu0 0.0
    %782 = vmatpush2.xpose.msra.mxu0 0.0
    %783 = vmatprep.subr.mxu0 0.0
    %784 = vmatpush2.xpose.msra.mxu0 0.0
    %785 = vmatprep.subr.mxu0 0.0
    %786 = vmatpush2.xpose.msra.mxu0 0.0
    %787 = vmatprep.subr.mxu0 0.0
    %788 = vmatpush2.xpose.msra.mxu0 0.0
    %789 = vmatprep.subr.mxu0 0.0
    %790 = vmatpush2.xpose.msra.mxu0 0.0
    %791 = vmatprep.subr.mxu0 0.0
    %792 = vmatpush2.xpose.msra.mxu0 0.0
    %793 = vmatprep.subr.mxu0 0.0
    %794 = vmatpush2.xpose.msra.mxu0 0.0
    %795 = vmatprep.subr.mxu0 0.0
    %796 = vmatpush2.xpose.msra.mxu0 0.0
    %797 = vmatprep.subr.mxu0 0.0
    %798 = vmatpush2.xpose.msra.mxu0 0.0
    %799 = vmatprep.subr.mxu0 0.0
    %800 = vmatpush2.xpose.msra.mxu0 0.0
    %801 = vmatprep.subr.mxu0 0.0
    %802 = vmatpush2.xpose.msra.mxu0 0.0
    %803 = vmatprep.subr.mxu0 0.0
    %804 = vmatpush2.xpose.msra.mxu0 0.0
    %805 = vmatprep.subr.mxu0 0.0
    %806 = vmatpush2.xpose.msra.mxu0 0.0
    %807 = vmatprep.subr.mxu0 0.0
    %808 = vmatpush2.xpose.msra.mxu0 0.0
    %809 = vmatprep.subr.mxu0 0.0
    %810 = vmatpush2.xpose.msra.mxu0 0.0
    %811 = vmatprep.mubr.f32.mxu0 0.0
    %812 = vmatmul.mubr.f32.gmra.mxu0 %v741
    %v813 = vpop.f32.mrf.mxu0
    %v814 = vadd.f32 0.0, %v813
    %v815 = vpop.f32.mrf.mxu0
    %816 = vdwg.mxu0
    %817 = vrot.lane.b32.xlu0 %v206, 120
    %v818 = vpop.permute.xlu0 %817
    %819 = vrot.lane.b32.xlu0 %v306, 120
    %v820 = vpop.permute.xlu0 %819
    %821 = vrot.lane.b32.xlu0 %v311, 120
    %v822 = vpop.permute.xlu0 %821
    %v823 = vsel %vm407, %v818, 0
    %v825 = vsel %vm407, %v820, 0
    %v827 = vsel %vm407, %v822, 0
    %829 = vmatprep.subr.mxu0 0.0
    %830 = vmatpush1.xpose.msra.mxu0 0.0
    %831 = vmatprep.subr.mxu0 0.0
    %832 = vmatpush1.xpose.msra.mxu0 0.0
    %833 = vmatprep.subr.mxu0 0.0
    %834 = vmatpush1.xpose.msra.mxu0 0.0
    %835 = vmatprep.subr.mxu0 0.0
    %836 = vmatpush1.xpose.msra.mxu0 0.0
    %837 = vmatprep.subr.mxu0 0.0
    %838 = vmatpush1.xpose.msra.mxu0 0.0
    %839 = vmatprep.subr.mxu0 0.0
    %840 = vmatpush1.xpose.msra.mxu0 0.0
    %841 = vmatprep.subr.mxu0 0.0
    %842 = vmatpush1.xpose.msra.mxu0 0.0
    %843 = vmatprep.subr.mxu0 0.0
    %844 = vmatpush1.xpose.msra.mxu0 0.0
    %845 = vmatprep.subr.mxu0 0.0
    %846 = vmatpush1.xpose.msra.mxu0 0.0
    %847 = vmatprep.subr.mxu0 0.0
    %848 = vmatpush1.xpose.msra.mxu0 0.0
    %849 = vmatprep.subr.mxu0 0.0
    %850 = vmatpush1.xpose.msra.mxu0 0.0
    %851 = vmatprep.subr.mxu0 0.0
    %852 = vmatpush1.xpose.msra.mxu0 0.0
    %853 = vmatprep.subr.mxu0 0.0
    %854 = vmatpush1.xpose.msra.mxu0 0.0
    %855 = vmatprep.subr.mxu0 0.0
    %856 = vmatpush1.xpose.msra.mxu0 0.0
    %857 = vmatprep.subr.mxu0 0.0
    %858 = vmatpush1.xpose.msra.mxu0 %v827
    %859 = vmatprep.subr.mxu0 0.0
    %860 = vmatpush1.xpose.msra.mxu0 %v825
    %861 = vmatprep.subr.mxu0 0.0
    %862 = vmatpush2.xpose.msra.mxu0 0.0
    %863 = vmatprep.subr.mxu0 0.0
    %864 = vmatpush2.xpose.msra.mxu0 0.0
    %865 = vmatprep.subr.mxu0 0.0
    %866 = vmatpush2.xpose.msra.mxu0 0.0
    %867 = vmatprep.subr.mxu0 0.0
    %868 = vmatpush2.xpose.msra.mxu0 0.0
    %869 = vmatprep.subr.mxu0 0.0
    %870 = vmatpush2.xpose.msra.mxu0 0.0
    %871 = vmatprep.subr.mxu0 0.0
    %872 = vmatpush2.xpose.msra.mxu0 0.0
    %873 = vmatprep.subr.mxu0 0.0
    %874 = vmatpush2.xpose.msra.mxu0 0.0
    %875 = vmatprep.subr.mxu0 0.0
    %876 = vmatpush2.xpose.msra.mxu0 0.0
    %877 = vmatprep.subr.mxu0 0.0
    %878 = vmatpush2.xpose.msra.mxu0 0.0
    %879 = vmatprep.subr.mxu0 0.0
    %880 = vmatpush2.xpose.msra.mxu0 0.0
    %881 = vmatprep.subr.mxu0 0.0
    %882 = vmatpush2.xpose.msra.mxu0 0.0
    %883 = vmatprep.subr.mxu0 0.0
    %884 = vmatpush2.xpose.msra.mxu0 0.0
    %885 = vmatprep.subr.mxu0 0.0
    %886 = vmatpush2.xpose.msra.mxu0 0.0
    %887 = vmatprep.subr.mxu0 0.0
    %888 = vmatpush2.xpose.msra.mxu0 0.0
    %889 = vmatprep.subr.mxu0 0.0
    %890 = vmatpush2.xpose.msra.mxu0 0.0
    %891 = vmatprep.subr.mxu0 0.0
    %892 = vmatpush2.xpose.msra.mxu0 0.0
    %893 = vmatprep.mubr.f32.mxu0 0.0
    %894 = vmatmul.mubr.f32.gmra.mxu0 %v823
    %v895 = vpop.f32.mrf.mxu0
    %v896 = vadd.f32 0.0, %v895
    %v897 = vpop.f32.mrf.mxu0
    %898 = vdwg.mxu0
    %v899 = vsel %vm566, %v814, -inf
    %900 = vmax.xlane.f32.xlu0 %v899
    %v901 = vpop.xlane.xlu0 %900
    %v902 = vsel %vm566, %v896, -inf
    %903 = vmax.xlane.f32.xlu0 %v902
    %v904 = vpop.xlane.xlu0 %903
    %v905 = vsub.f32 %v814, %v901
    %v906 = vsub.f32 %v896, %v904
    %v907 = vmul.f32 %v905, 1.442695
    %v908 = vpow.pop %v907
    %v909 = vmul.f32 %v906, 1.442695
    %v910 = vpow.pop %v909
    %v911 = vsel %vm566, %v908, 0.0
    %912 = vadd.xlane.f32.xlu0 %v911
    %v913 = vpop.xlane.xlu0 %912
    %v914 = vsel %vm566, %v910, 0.0
    %915 = vadd.xlane.f32.xlu0 %v914
    %v916 = vpop.xlane.xlu0 %915
    %v917 = vrcp.pop %v913
    %v918 = vmul.f32 %v908, %v917
    %v919 = vrcp.pop %v916
    %v920 = vmul.f32 %v910, %v919
    %923 = vrot.lane.b32.xlu0 %v389, 120
    %v924 = vpop.permute.xlu0 %923
    %925 = vrot.lane.b32.xlu0 %v394, 120
    %v926 = vpop.permute.xlu0 %925
    %v930 = vsel %vm566, %v918, 0
    %932 = vmatprep.subr.mxu0 0.0
    %933 = vmatpush1.msra.mxu0 0.0
    %934 = vmatprep.subr.mxu0 0.0
    %935 = vmatpush1.msra.mxu0 0.0
    %936 = vmatprep.subr.mxu0 0.0
    %937 = vmatpush1.msra.mxu0 0.0
    %938 = vmatprep.subr.mxu0 0.0
    %939 = vmatpush1.msra.mxu0 0.0
    %940 = vmatprep.subr.mxu0 0.0
    %941 = vmatpush1.msra.mxu0 0.0
    %942 = vmatprep.subr.mxu0 0.0
    %943 = vmatpush1.msra.mxu0 0.0
    %944 = vmatprep.subr.mxu0 0.0
    %945 = vmatpush1.msra.mxu0 0.0
    %946 = vmatprep.subr.mxu0 0.0
    %947 = vmatpush1.msra.mxu0 0.0
    %948 = vmatprep.subr.mxu0 0.0
    %949 = vmatpush1.msra.mxu0 0.0
    %950 = vmatprep.subr.mxu0 0.0
    %951 = vmatpush1.msra.mxu0 0.0
    %952 = vmatprep.subr.mxu0 0.0
    %953 = vmatpush1.msra.mxu0 0.0
    %954 = vmatprep.subr.mxu0 0.0
    %955 = vmatpush1.msra.mxu0 0.0
    %956 = vmatprep.subr.mxu0 0.0
    %957 = vmatpush1.msra.mxu0 0.0
    %958 = vmatprep.subr.mxu0 0.0
    %959 = vmatpush1.msra.mxu0 0.0
    %960 = vmatprep.subr.mxu0 0.0
    %961 = vmatpush1.msra.mxu0 %v926
    %962 = vmatprep.subr.mxu0 0.0
    %963 = vmatpush1.msra.mxu0 %v924
    %964 = vmatprep.subr.mxu0 0.0
    %965 = vmatpush2.msra.mxu0 0.0
    %966 = vmatprep.subr.mxu0 0.0
    %967 = vmatpush2.msra.mxu0 0.0
    %968 = vmatprep.subr.mxu0 0.0
    %969 = vmatpush2.msra.mxu0 0.0
    %970 = vmatprep.subr.mxu0 0.0
    %971 = vmatpush2.msra.mxu0 0.0
    %972 = vmatprep.subr.mxu0 0.0
    %973 = vmatpush2.msra.mxu0 0.0
    %974 = vmatprep.subr.mxu0 0.0
    %975 = vmatpush2.msra.mxu0 0.0
    %976 = vmatprep.subr.mxu0 0.0
    %977 = vmatpush2.msra.mxu0 0.0
    %978 = vmatprep.subr.mxu0 0.0
    %979 = vmatpush2.msra.mxu0 0.0
    %980 = vmatprep.subr.mxu0 0.0
    %981 = vmatpush2.msra.mxu0 0.0
    %982 = vmatprep.subr.mxu0 0.0
    %983 = vmatpush2.msra.mxu0 0.0
    %984 = vmatprep.subr.mxu0 0.0
    %985 = vmatpush2.msra.mxu0 0.0
    %986 = vmatprep.subr.mxu0 0.0
    %987 = vmatpush2.msra.mxu0 0.0
    %988 = vmatprep.subr.mxu0 0.0
    %989 = vmatpush2.msra.mxu0 0.0
    %990 = vmatprep.subr.mxu0 0.0
    %991 = vmatpush2.msra.mxu0 0.0
    %992 = vmatprep.subr.mxu0 0.0
    %993 = vmatpush2.msra.mxu0 0.0
    %994 = vmatprep.subr.mxu0 0.0
    %995 = vmatpush2.msra.mxu0 0.0
    %996 = vmatprep.mubr.f32.mxu0 0.0
    %997 = vmatmul.mubr.f32.gmra.mxu0 %v930
    %v998 = vpop.f32.mrf.mxu0
    %v999 = vadd.f32 0.0, %v998
    %v1000 = vpop.f32.mrf.mxu0
    %1001 = vdwg.mxu0
    %1004 = vrot.lane.b32.xlu0 %v399, 120
    %v1005 = vpop.permute.xlu0 %1004
    %1006 = vrot.lane.b32.xlu0 %v404, 120
    %v1007 = vpop.permute.xlu0 %1006
    %v1011 = vsel %vm566, %v920, 0
    %1013 = vmatprep.subr.mxu0 0.0
    %1014 = vmatpush1.msra.mxu0 0.0
    %1015 = vmatprep.subr.mxu0 0.0
    %1016 = vmatpush1.msra.mxu0 0.0
    %1017 = vmatprep.subr.mxu0 0.0
    %1018 = vmatpush1.msra.mxu0 0.0
    %1019 = vmatprep.subr.mxu0 0.0
    %1020 = vmatpush1.msra.mxu0 0.0
    %1021 = vmatprep.subr.mxu0 0.0
    %1022 = vmatpush1.msra.mxu0 0.0
    %1023 = vmatprep.subr.mxu0 0.0
    %1024 = vmatpush1.msra.mxu0 0.0
    %1025 = vmatprep.subr.mxu0 0.0
    %1026 = vmatpush1.msra.mxu0 0.0
    %1027 = vmatprep.subr.mxu0 0.0
    %1028 = vmatpush1.msra.mxu0 0.0
    %1029 = vmatprep.subr.mxu0 0.0
    %1030 = vmatpush1.msra.mxu0 0.0
    %1031 = vmatprep.subr.mxu0 0.0
    %1032 = vmatpush1.msra.mxu0 0.0
    %1033 = vmatprep.subr.mxu0 0.0
    %1034 = vmatpush1.msra.mxu0 0.0
    %1035 = vmatprep.subr.mxu0 0.0
    %1036 = vmatpush1.msra.mxu0 0.0
    %1037 = vmatprep.subr.mxu0 0.0
    %1038 = vmatpush1.msra.mxu0 0.0
    %1039 = vmatprep.subr.mxu0 0.0
    %1040 = vmatpush1.msra.mxu0 0.0
    %1041 = vmatprep.subr.mxu0 0.0
    %1042 = vmatpush1.msra.mxu0 %v1007
    %1043 = vmatprep.subr.mxu0 0.0
    %1044 = vmatpush1.msra.mxu0 %v1005
    %1045 = vmatprep.subr.mxu0 0.0
    %1046 = vmatpush2.msra.mxu0 0.0
    %1047 = vmatprep.subr.mxu0 0.0
    %1048 = vmatpush2.msra.mxu0 0.0
    %1049 = vmatprep.subr.mxu0 0.0
    %1050 = vmatpush2.msra.mxu0 0.0
    %1051 = vmatprep.subr.mxu0 0.0
    %1052 = vmatpush2.msra.mxu0 0.0
    %1053 = vmatprep.subr.mxu0 0.0
    %1054 = vmatpush2.msra.mxu0 0.0
    %1055 = vmatprep.subr.mxu0 0.0
    %1056 = vmatpush2.msra.mxu0 0.0
    %1057 = vmatprep.subr.mxu0 0.0
    %1058 = vmatpush2.msra.mxu0 0.0
    %1059 = vmatprep.subr.mxu0 0.0
    %1060 = vmatpush2.msra.mxu0 0.0
    %1061 = vmatprep.subr.mxu0 0.0
    %1062 = vmatpush2.msra.mxu0 0.0
    %1063 = vmatprep.subr.mxu0 0.0
    %1064 = vmatpush2.msra.mxu0 0.0
    %1065 = vmatprep.subr.mxu0 0.0
    %1066 = vmatpush2.msra.mxu0 0.0
    %1067 = vmatprep.subr.mxu0 0.0
    %1068 = vmatpush2.msra.mxu0 0.0
    %1069 = vmatprep.subr.mxu0 0.0
    %1070 = vmatpush2.msra.mxu0 0.0
    %1071 = vmatprep.subr.mxu0 0.0
    %1072 = vmatpush2.msra.mxu0 0.0
    %1073 = vmatprep.subr.mxu0 0.0
    %1074 = vmatpush2.msra.mxu0 0.0
    %1075 = vmatprep.subr.mxu0 0.0
    %1076 = vmatpush2.msra.mxu0 0.0
    %1077 = vmatprep.mubr.f32.mxu0 0.0
    %1078 = vmatmul.mubr.f32.gmra.mxu0 %v1011
    %v1079 = vpop.f32.mrf.mxu0
    %v1080 = vadd.f32 0.0, %v1079
    %v1081 = vpop.f32.mrf.mxu0
    %1082 = vdwg.mxu0
    %1083 = vrot.lane.b32.xlu0 %v201, 112
    %v1084 = vpop.permute.xlu0 %1083
    %1085 = vrot.lane.b32.xlu0 %v296, 112
    %v1086 = vpop.permute.xlu0 %1085
    %1087 = vrot.lane.b32.xlu0 %v301, 112
    %v1088 = vpop.permute.xlu0 %1087
    %v1089 = vsel %vm407, %v1084, 0
    %v1091 = vsel %vm407, %v1086, 0
    %v1093 = vsel %vm407, %v1088, 0
    %1095 = vmatprep.subr.mxu0 0.0
    %1096 = vmatpush1.xpose.msra.mxu0 0.0
    %1097 = vmatprep.subr.mxu0 0.0
    %1098 = vmatpush1.xpose.msra.mxu0 0.0
    %1099 = vmatprep.subr.mxu0 0.0
    %1100 = vmatpush1.xpose.msra.mxu0 0.0
    %1101 = vmatprep.subr.mxu0 0.0
    %1102 = vmatpush1.xpose.msra.mxu0 0.0
    %1103 = vmatprep.subr.mxu0 0.0
    %1104 = vmatpush1.xpose.msra.mxu0 0.0
    %1105 = vmatprep.subr.mxu0 0.0
    %1106 = vmatpush1.xpose.msra.mxu0 0.0
    %1107 = vmatprep.subr.mxu0 0.0
    %1108 = vmatpush1.xpose.msra.mxu0 0.0
    %1109 = vmatprep.subr.mxu0 0.0
    %1110 = vmatpush1.xpose.msra.mxu0 0.0
    %1111 = vmatprep.subr.mxu0 0.0
    %1112 = vmatpush1.xpose.msra.mxu0 0.0
    %1113 = vmatprep.subr.mxu0 0.0
    %1114 = vmatpush1.xpose.msra.mxu0 0.0
    %1115 = vmatprep.subr.mxu0 0.0
    %1116 = vmatpush1.xpose.msra.mxu0 0.0
    %1117 = vmatprep.subr.mxu0 0.0
    %1118 = vmatpush1.xpose.msra.mxu0 0.0
    %1119 = vmatprep.subr.mxu0 0.0
    %1120 = vmatpush1.xpose.msra.mxu0 0.0
    %1121 = vmatprep.subr.mxu0 0.0
    %1122 = vmatpush1.xpose.msra.mxu0 0.0
    %1123 = vmatprep.subr.mxu0 0.0
    %1124 = vmatpush1.xpose.msra.mxu0 %v1093
    %1125 = vmatprep.subr.mxu0 0.0
    %1126 = vmatpush1.xpose.msra.mxu0 %v1091
    %1127 = vmatprep.subr.mxu0 0.0
    %1128 = vmatpush2.xpose.msra.mxu0 0.0
    %1129 = vmatprep.subr.mxu0 0.0
    %1130 = vmatpush2.xpose.msra.mxu0 0.0
    %1131 = vmatprep.subr.mxu0 0.0
    %1132 = vmatpush2.xpose.msra.mxu0 0.0
    %1133 = vmatprep.subr.mxu0 0.0
    %1134 = vmatpush2.xpose.msra.mxu0 0.0
    %1135 = vmatprep.subr.mxu0 0.0
    %1136 = vmatpush2.xpose.msra.mxu0 0.0
    %1137 = vmatprep.subr.mxu0 0.0
    %1138 = vmatpush2.xpose.msra.mxu0 0.0
    %1139 = vmatprep.subr.mxu0 0.0
    %1140 = vmatpush2.xpose.msra.mxu0 0.0
    %1141 = vmatprep.subr.mxu0 0.0
    %1142 = vmatpush2.xpose.msra.mxu0 0.0
    %1143 = vmatprep.subr.mxu0 0.0
    %1144 = vmatpush2.xpose.msra.mxu0 0.0
    %1145 = vmatprep.subr.mxu0 0.0
    %1146 = vmatpush2.xpose.msra.mxu0 0.0
    %1147 = vmatprep.subr.mxu0 0.0
    %1148 = vmatpush2.xpose.msra.mxu0 0.0
    %1149 = vmatprep.subr.mxu0 0.0
    %1150 = vmatpush2.xpose.msra.mxu0 0.0
    %1151 = vmatprep.subr.mxu0 0.0
    %1152 = vmatpush2.xpose.msra.mxu0 0.0
    %1153 = vmatprep.subr.mxu0 0.0
    %1154 = vmatpush2.xpose.msra.mxu0 0.0
    %1155 = vmatprep.subr.mxu0 0.0
    %1156 = vmatpush2.xpose.msra.mxu0 0.0
    %1157 = vmatprep.subr.mxu0 0.0
    %1158 = vmatpush2.xpose.msra.mxu0 0.0
    %1159 = vmatprep.mubr.f32.mxu0 0.0
    %1160 = vmatmul.mubr.f32.gmra.mxu0 %v1089
    %v1161 = vpop.f32.mrf.mxu0
    %v1162 = vadd.f32 0.0, %v1161
    %v1163 = vpop.f32.mrf.mxu0
    %1164 = vdwg.mxu0
    %1165 = vrot.lane.b32.xlu0 %v206, 112
    %v1166 = vpop.permute.xlu0 %1165
    %1167 = vrot.lane.b32.xlu0 %v306, 112
    %v1168 = vpop.permute.xlu0 %1167
    %1169 = vrot.lane.b32.xlu0 %v311, 112
    %v1170 = vpop.permute.xlu0 %1169
    %v1171 = vsel %vm407, %v1166, 0
    %v1173 = vsel %vm407, %v1168, 0
    %v1175 = vsel %vm407, %v1170, 0
    %1177 = vmatprep.subr.mxu0 0.0
    %1178 = vmatpush1.xpose.msra.mxu0 0.0
    %1179 = vmatprep.subr.mxu0 0.0
    %1180 = vmatpush1.xpose.msra.mxu0 0.0
    %1181 = vmatprep.subr.mxu0 0.0
    %1182 = vmatpush1.xpose.msra.mxu0 0.0
    %1183 = vmatprep.subr.mxu0 0.0
    %1184 = vmatpush1.xpose.msra.mxu0 0.0
    %1185 = vmatprep.subr.mxu0 0.0
    %1186 = vmatpush1.xpose.msra.mxu0 0.0
    %1187 = vmatprep.subr.mxu0 0.0
    %1188 = vmatpush1.xpose.msra.mxu0 0.0
    %1189 = vmatprep.subr.mxu0 0.0
    %1190 = vmatpush1.xpose.msra.mxu0 0.0
    %1191 = vmatprep.subr.mxu0 0.0
    %1192 = vmatpush1.xpose.msra.mxu0 0.0
    %1193 = vmatprep.subr.mxu0 0.0
    %1194 = vmatpush1.xpose.msra.mxu0 0.0
    %1195 = vmatprep.subr.mxu0 0.0
    %1196 = vmatpush1.xpose.msra.mxu0 0.0
    %1197 = vmatprep.subr.mxu0 0.0
    %1198 = vmatpush1.xpose.msra.mxu0 0.0
    %1199 = vmatprep.subr.mxu0 0.0
    %1200 = vmatpush1.xpose.msra.mxu0 0.0
    %1201 = vmatprep.subr.mxu0 0.0
    %1202 = vmatpush1.xpose.msra.mxu0 0.0
    %1203 = vmatprep.subr.mxu0 0.0
    %1204 = vmatpush1.xpose.msra.mxu0 0.0
    %1205 = vmatprep.subr.mxu0 0.0
    %1206 = vmatpush1.xpose.msra.mxu0 %v1175
    %1207 = vmatprep.subr.mxu0 0.0
    %1208 = vmatpush1.xpose.msra.mxu0 %v1173
    %1209 = vmatprep.subr.mxu0 0.0
    %1210 = vmatpush2.xpose.msra.mxu0 0.0
    %1211 = vmatprep.subr.mxu0 0.0
    %1212 = vmatpush2.xpose.msra.mxu0 0.0
    %1213 = vmatprep.subr.mxu0 0.0
    %1214 = vmatpush2.xpose.msra.mxu0 0.0
    %1215 = vmatprep.subr.mxu0 0.0
    %1216 = vmatpush2.xpose.msra.mxu0 0.0
    %1217 = vmatprep.subr.mxu0 0.0
    %1218 = vmatpush2.xpose.msra.mxu0 0.0
    %1219 = vmatprep.subr.mxu0 0.0
    %1220 = vmatpush2.xpose.msra.mxu0 0.0
    %1221 = vmatprep.subr.mxu0 0.0
    %1222 = vmatpush2.xpose.msra.mxu0 0.0
    %1223 = vmatprep.subr.mxu0 0.0
    %1224 = vmatpush2.xpose.msra.mxu0 0.0
    %1225 = vmatprep.subr.mxu0 0.0
    %1226 = vmatpush2.xpose.msra.mxu0 0.0
    %1227 = vmatprep.subr.mxu0 0.0
    %1228 = vmatpush2.xpose.msra.mxu0 0.0
    %1229 = vmatprep.subr.mxu0 0.0
    %1230 = vmatpush2.xpose.msra.mxu0 0.0
    %1231 = vmatprep.subr.mxu0 0.0
    %1232 = vmatpush2.xpose.msra.mxu0 0.0
    %1233 = vmatprep.subr.mxu0 0.0
    %1234 = vmatpush2.xpose.msra.mxu0 0.0
    %1235 = vmatprep.subr.mxu0 0.0
    %1236 = vmatpush2.xpose.msra.mxu0 0.0
    %1237 = vmatprep.subr.mxu0 0.0
    %1238 = vmatpush2.xpose.msra.mxu0 0.0
    %1239 = vmatprep.subr.mxu0 0.0
    %1240 = vmatpush2.xpose.msra.mxu0 0.0
    %1241 = vmatprep.mubr.f32.mxu0 0.0
    %1242 = vmatmul.mubr.f32.gmra.mxu0 %v1171
    %v1243 = vpop.f32.mrf.mxu0
    %v1244 = vadd.f32 0.0, %v1243
    %v1245 = vpop.f32.mrf.mxu0
    %1246 = vdwg.mxu0
    %v1247 = vsel %vm566, %v1162, -inf
    %1248 = vmax.xlane.f32.xlu0 %v1247
    %v1249 = vpop.xlane.xlu0 %1248
    %v1250 = vsel %vm566, %v1244, -inf
    %1251 = vmax.xlane.f32.xlu0 %v1250
    %v1252 = vpop.xlane.xlu0 %1251
    %v1253 = vsub.f32 %v1162, %v1249
    %v1254 = vsub.f32 %v1244, %v1252
    %v1255 = vmul.f32 %v1253, 1.442695
    %v1256 = vpow.pop %v1255
    %v1257 = vmul.f32 %v1254, 1.442695
    %v1258 = vpow.pop %v1257
    %v1259 = vsel %vm566, %v1256, 0.0
    %1260 = vadd.xlane.f32.xlu0 %v1259
    %v1261 = vpop.xlane.xlu0 %1260
    %v1262 = vsel %vm566, %v1258, 0.0
    %1263 = vadd.xlane.f32.xlu0 %v1262
    %v1264 = vpop.xlane.xlu0 %1263
    %v1265 = vrcp.pop %v1261
    %v1266 = vmul.f32 %v1256, %v1265
    %v1267 = vrcp.pop %v1264
    %v1268 = vmul.f32 %v1258, %v1267
    %1269 = vrot.lane.b32.xlu0 %v389, 112
    %v1270 = vpop.permute.xlu0 %1269
    %1271 = vrot.lane.b32.xlu0 %v394, 112
    %v1272 = vpop.permute.xlu0 %1271
    %v1276 = vsel %vm566, %v1266, 0
    %1278 = vmatprep.subr.mxu0 0.0
    %1279 = vmatpush1.msra.mxu0 0.0
    %1280 = vmatprep.subr.mxu0 0.0
    %1281 = vmatpush1.msra.mxu0 0.0
    %1282 = vmatprep.subr.mxu0 0.0
    %1283 = vmatpush1.msra.mxu0 0.0
    %1284 = vmatprep.subr.mxu0 0.0
    %1285 = vmatpush1.msra.mxu0 0.0
    %1286 = vmatprep.subr.mxu0 0.0
    %1287 = vmatpush1.msra.mxu0 0.0
    %1288 = vmatprep.subr.mxu0 0.0
    %1289 = vmatpush1.msra.mxu0 0.0
    %1290 = vmatprep.subr.mxu0 0.0
    %1291 = vmatpush1.msra.mxu0 0.0
    %1292 = vmatprep.subr.mxu0 0.0
    %1293 = vmatpush1.msra.mxu0 0.0
    %1294 = vmatprep.subr.mxu0 0.0
    %1295 = vmatpush1.msra.mxu0 0.0
    %1296 = vmatprep.subr.mxu0 0.0
    %1297 = vmatpush1.msra.mxu0 0.0
    %1298 = vmatprep.subr.mxu0 0.0
    %1299 = vmatpush1.msra.mxu0 0.0
    %1300 = vmatprep.subr.mxu0 0.0
    %1301 = vmatpush1.msra.mxu0 0.0
    %1302 = vmatprep.subr.mxu0 0.0
    %1303 = vmatpush1.msra.mxu0 0.0
    %1304 = vmatprep.subr.mxu0 0.0
    %1305 = vmatpush1.msra.mxu0 0.0
    %1306 = vmatprep.subr.mxu0 0.0
    %1307 = vmatpush1.msra.mxu0 %v1272
    %1308 = vmatprep.subr.mxu0 0.0
    %1309 = vmatpush1.msra.mxu0 %v1270
    %1310 = vmatprep.subr.mxu0 0.0
    %1311 = vmatpush2.msra.mxu0 0.0
    %1312 = vmatprep.subr.mxu0 0.0
    %1313 = vmatpush2.msra.mxu0 0.0
    %1314 = vmatprep.subr.mxu0 0.0
    %1315 = vmatpush2.msra.mxu0 0.0
    %1316 = vmatprep.subr.mxu0 0.0
    %1317 = vmatpush2.msra.mxu0 0.0
    %1318 = vmatprep.subr.mxu0 0.0
    %1319 = vmatpush2.msra.mxu0 0.0
    %1320 = vmatprep.subr.mxu0 0.0
    %1321 = vmatpush2.msra.mxu0 0.0
    %1322 = vmatprep.subr.mxu0 0.0
    %1323 = vmatpush2.msra.mxu0 0.0
    %1324 = vmatprep.subr.mxu0 0.0
    %1325 = vmatpush2.msra.mxu0 0.0
    %1326 = vmatprep.subr.mxu0 0.0
    %1327 = vmatpush2.msra.mxu0 0.0
    %1328 = vmatprep.subr.mxu0 0.0
    %1329 = vmatpush2.msra.mxu0 0.0
    %1330 = vmatprep.subr.mxu0 0.0
    %1331 = vmatpush2.msra.mxu0 0.0
    %1332 = vmatprep.subr.mxu0 0.0
    %1333 = vmatpush2.msra.mxu0 0.0
    %1334 = vmatprep.subr.mxu0 0.0
    %1335 = vmatpush2.msra.mxu0 0.0
    %1336 = vmatprep.subr.mxu0 0.0
    %1337 = vmatpush2.msra.mxu0 0.0
    %1338 = vmatprep.subr.mxu0 0.0
    %1339 = vmatpush2.msra.mxu0 0.0
    %1340 = vmatprep.subr.mxu0 0.0
    %1341 = vmatpush2.msra.mxu0 0.0
    %1342 = vmatprep.mubr.f32.mxu0 0.0
    %1343 = vmatmul.mubr.f32.gmra.mxu0 %v1276
    %v1344 = vpop.f32.mrf.mxu0
    %v1345 = vadd.f32 0.0, %v1344
    %v1346 = vpop.f32.mrf.mxu0
    %1347 = vdwg.mxu0
    %1348 = vrot.lane.b32.xlu0 %v399, 112
    %v1349 = vpop.permute.xlu0 %1348
    %1350 = vrot.lane.b32.xlu0 %v404, 112
    %v1351 = vpop.permute.xlu0 %1350
    %v1355 = vsel %vm566, %v1268, 0
    %1357 = vmatprep.subr.mxu0 0.0
    %1358 = vmatpush1.msra.mxu0 0.0
    %1359 = vmatprep.subr.mxu0 0.0
    %1360 = vmatpush1.msra.mxu0 0.0
    %1361 = vmatprep.subr.mxu0 0.0
    %1362 = vmatpush1.msra.mxu0 0.0
    %1363 = vmatprep.subr.mxu0 0.0
    %1364 = vmatpush1.msra.mxu0 0.0
    %1365 = vmatprep.subr.mxu0 0.0
    %1366 = vmatpush1.msra.mxu0 0.0
    %1367 = vmatprep.subr.mxu0 0.0
    %1368 = vmatpush1.msra.mxu0 0.0
    %1369 = vmatprep.subr.mxu0 0.0
    %1370 = vmatpush1.msra.mxu0 0.0
    %1371 = vmatprep.subr.mxu0 0.0
    %1372 = vmatpush1.msra.mxu0 0.0
    %1373 = vmatprep.subr.mxu0 0.0
    %1374 = vmatpush1.msra.mxu0 0.0
    %1375 = vmatprep.subr.mxu0 0.0
    %1376 = vmatpush1.msra.mxu0 0.0
    %1377 = vmatprep.subr.mxu0 0.0
    %1378 = vmatpush1.msra.mxu0 0.0
    %1379 = vmatprep.subr.mxu0 0.0
    %1380 = vmatpush1.msra.mxu0 0.0
    %1381 = vmatprep.subr.mxu0 0.0
    %1382 = vmatpush1.msra.mxu0 0.0
    %1383 = vmatprep.subr.mxu0 0.0
    %1384 = vmatpush1.msra.mxu0 0.0
    %1385 = vmatprep.subr.mxu0 0.0
    %1386 = vmatpush1.msra.mxu0 %v1351
    %1387 = vmatprep.subr.mxu0 0.0
    %1388 = vmatpush1.msra.mxu0 %v1349
    %1389 = vmatprep.subr.mxu0 0.0
    %1390 = vmatpush2.msra.mxu0 0.0
    %1391 = vmatprep.subr.mxu0 0.0
    %1392 = vmatpush2.msra.mxu0 0.0
    %1393 = vmatprep.subr.mxu0 0.0
    %1394 = vmatpush2.msra.mxu0 0.0
    %1395 = vmatprep.subr.mxu0 0.0
    %1396 = vmatpush2.msra.mxu0 0.0
    %1397 = vmatprep.subr.mxu0 0.0
    %1398 = vmatpush2.msra.mxu0 0.0
    %1399 = vmatprep.subr.mxu0 0.0
    %1400 = vmatpush2.msra.mxu0 0.0
    %1401 = vmatprep.subr.mxu0 0.0
    %1402 = vmatpush2.msra.mxu0 0.0
    %1403 = vmatprep.subr.mxu0 0.0
    %1404 = vmatpush2.msra.mxu0 0.0
    %1405 = vmatprep.subr.mxu0 0.0
    %1406 = vmatpush2.msra.mxu0 0.0
    %1407 = vmatprep.subr.mxu0 0.0
    %1408 = vmatpush2.msra.mxu0 0.0
    %1409 = vmatprep.subr.mxu0 0.0
    %1410 = vmatpush2.msra.mxu0 0.0
    %1411 = vmatprep.subr.mxu0 0.0
    %1412 = vmatpush2.msra.mxu0 0.0
    %1413 = vmatprep.subr.mxu0 0.0
    %1414 = vmatpush2.msra.mxu0 0.0
    %1415 = vmatprep.subr.mxu0 0.0
    %1416 = vmatpush2.msra.mxu0 0.0
    %1417 = vmatprep.subr.mxu0 0.0
    %1418 = vmatpush2.msra.mxu0 0.0
    %1419 = vmatprep.subr.mxu0 0.0
    %1420 = vmatpush2.msra.mxu0 0.0
    %1421 = vmatprep.mubr.f32.mxu0 0.0
    %1422 = vmatmul.mubr.f32.gmra.mxu0 %v1355
    %v1423 = vpop.f32.mrf.mxu0
    %v1424 = vadd.f32 0.0, %v1423
    %v1425 = vpop.f32.mrf.mxu0
    %1426 = vdwg.mxu0
    %1427 = vrot.lane.b32.xlu0 %v201, 104
    %v1428 = vpop.permute.xlu0 %1427
    %1429 = vrot.lane.b32.xlu0 %v296, 104
    %v1430 = vpop.permute.xlu0 %1429
    %1431 = vrot.lane.b32.xlu0 %v301, 104
    %v1432 = vpop.permute.xlu0 %1431
    %v1433 = vsel %vm407, %v1428, 0
    %v1435 = vsel %vm407, %v1430, 0
    %v1437 = vsel %vm407, %v1432, 0
    %1439 = vmatprep.subr.mxu0 0.0
    %1440 = vmatpush1.xpose.msra.mxu0 0.0
    %1441 = vmatprep.subr.mxu0 0.0
    %1442 = vmatpush1.xpose.msra.mxu0 0.0
    %1443 = vmatprep.subr.mxu0 0.0
    %1444 = vmatpush1.xpose.msra.mxu0 0.0
    %1445 = vmatprep.subr.mxu0 0.0
    %1446 = vmatpush1.xpose.msra.mxu0 0.0
    %1447 = vmatprep.subr.mxu0 0.0
    %1448 = vmatpush1.xpose.msra.mxu0 0.0
    %1449 = vmatprep.subr.mxu0 0.0
    %1450 = vmatpush1.xpose.msra.mxu0 0.0
    %1451 = vmatprep.subr.mxu0 0.0
    %1452 = vmatpush1.xpose.msra.mxu0 0.0
    %1453 = vmatprep.subr.mxu0 0.0
    %1454 = vmatpush1.xpose.msra.mxu0 0.0
    %1455 = vmatprep.subr.mxu0 0.0
    %1456 = vmatpush1.xpose.msra.mxu0 0.0
    %1457 = vmatprep.subr.mxu0 0.0
    %1458 = vmatpush1.xpose.msra.mxu0 0.0
    %1459 = vmatprep.subr.mxu0 0.0
    %1460 = vmatpush1.xpose.msra.mxu0 0.0
    %1461 = vmatprep.subr.mxu0 0.0
    %1462 = vmatpush1.xpose.msra.mxu0 0.0
    %1463 = vmatprep.subr.mxu0 0.0
    %1464 = vmatpush1.xpose.msra.mxu0 0.0
    %1465 = vmatprep.subr.mxu0 0.0
    %1466 = vmatpush1.xpose.msra.mxu0 0.0
    %1467 = vmatprep.subr.mxu0 0.0
    %1468 = vmatpush1.xpose.msra.mxu0 %v1437
    %1469 = vmatprep.subr.mxu0 0.0
    %1470 = vmatpush1.xpose.msra.mxu0 %v1435
    %1471 = vmatprep.subr.mxu0 0.0
    %1472 = vmatpush2.xpose.msra.mxu0 0.0
    %1473 = vmatprep.subr.mxu0 0.0
    %1474 = vmatpush2.xpose.msra.mxu0 0.0
    %1475 = vmatprep.subr.mxu0 0.0
    %1476 = vmatpush2.xpose.msra.mxu0 0.0
    %1477 = vmatprep.subr.mxu0 0.0
    %1478 = vmatpush2.xpose.msra.mxu0 0.0
    %1479 = vmatprep.subr.mxu0 0.0
    %1480 = vmatpush2.xpose.msra.mxu0 0.0
    %1481 = vmatprep.subr.mxu0 0.0
    %1482 = vmatpush2.xpose.msra.mxu0 0.0
    %1483 = vmatprep.subr.mxu0 0.0
    %1484 = vmatpush2.xpose.msra.mxu0 0.0
    %1485 = vmatprep.subr.mxu0 0.0
    %1486 = vmatpush2.xpose.msra.mxu0 0.0
    %1487 = vmatprep.subr.mxu0 0.0
    %1488 = vmatpush2.xpose.msra.mxu0 0.0
    %1489 = vmatprep.subr.mxu0 0.0
    %1490 = vmatpush2.xpose.msra.mxu0 0.0
    %1491 = vmatprep.subr.mxu0 0.0
    %1492 = vmatpush2.xpose.msra.mxu0 0.0
    %1493 = vmatprep.subr.mxu0 0.0
    %1494 = vmatpush2.xpose.msra.mxu0 0.0
    %1495 = vmatprep.subr.mxu0 0.0
    %1496 = vmatpush2.xpose.msra.mxu0 0.0
    %1497 = vmatprep.subr.mxu0 0.0
    %1498 = vmatpush2.xpose.msra.mxu0 0.0
    %1499 = vmatprep.subr.mxu0 0.0
    %1500 = vmatpush2.xpose.msra.mxu0 0.0
    %1501 = vmatprep.subr.mxu0 0.0
    %1502 = vmatpush2.xpose.msra.mxu0 0.0
    %1503 = vmatprep.mubr.f32.mxu0 0.0
    %1504 = vmatmul.mubr.f32.gmra.mxu0 %v1433
    %v1505 = vpop.f32.mrf.mxu0
    %v1506 = vadd.f32 0.0, %v1505
    %v1507 = vpop.f32.mrf.mxu0
    %1508 = vdwg.mxu0
    %1509 = vrot.lane.b32.xlu0 %v206, 104
    %v1510 = vpop.permute.xlu0 %1509
    %1511 = vrot.lane.b32.xlu0 %v306, 104
    %v1512 = vpop.permute.xlu0 %1511
    %1513 = vrot.lane.b32.xlu0 %v311, 104
    %v1514 = vpop.permute.xlu0 %1513
    %v1515 = vsel %vm407, %v1510, 0
    %v1517 = vsel %vm407, %v1512, 0
    %v1519 = vsel %vm407, %v1514, 0
    %1521 = vmatprep.subr.mxu0 0.0
    %1522 = vmatpush1.xpose.msra.mxu0 0.0
    %1523 = vmatprep.subr.mxu0 0.0
    %1524 = vmatpush1.xpose.msra.mxu0 0.0
    %1525 = vmatprep.subr.mxu0 0.0
    %1526 = vmatpush1.xpose.msra.mxu0 0.0
    %1527 = vmatprep.subr.mxu0 0.0
    %1528 = vmatpush1.xpose.msra.mxu0 0.0
    %1529 = vmatprep.subr.mxu0 0.0
    %1530 = vmatpush1.xpose.msra.mxu0 0.0
    %1531 = vmatprep.subr.mxu0 0.0
    %1532 = vmatpush1.xpose.msra.mxu0 0.0
    %1533 = vmatprep.subr.mxu0 0.0
    %1534 = vmatpush1.xpose.msra.mxu0 0.0
    %1535 = vmatprep.subr.mxu0 0.0
    %1536 = vmatpush1.xpose.msra.mxu0 0.0
    %1537 = vmatprep.subr.mxu0 0.0
    %1538 = vmatpush1.xpose.msra.mxu0 0.0
    %1539 = vmatprep.subr.mxu0 0.0
    %1540 = vmatpush1.xpose.msra.mxu0 0.0
    %1541 = vmatprep.subr.mxu0 0.0
    %1542 = vmatpush1.xpose.msra.mxu0 0.0
    %1543 = vmatprep.subr.mxu0 0.0
    %1544 = vmatpush1.xpose.msra.mxu0 0.0
    %1545 = vmatprep.subr.mxu0 0.0
    %1546 = vmatpush1.xpose.msra.mxu0 0.0
    %1547 = vmatprep.subr.mxu0 0.0
    %1548 = vmatpush1.xpose.msra.mxu0 0.0
    %1549 = vmatprep.subr.mxu0 0.0
    %1550 = vmatpush1.xpose.msra.mxu0 %v1519
    %1551 = vmatprep.subr.mxu0 0.0
    %1552 = vmatpush1.xpose.msra.mxu0 %v1517
    %1553 = vmatprep.subr.mxu0 0.0
    %1554 = vmatpush2.xpose.msra.mxu0 0.0
    %1555 = vmatprep.subr.mxu0 0.0
    %1556 = vmatpush2.xpose.msra.mxu0 0.0
    %1557 = vmatprep.subr.mxu0 0.0
    %1558 = vmatpush2.xpose.msra.mxu0 0.0
    %1559 = vmatprep.subr.mxu0 0.0
    %1560 = vmatpush2.xpose.msra.mxu0 0.0
    %1561 = vmatprep.subr.mxu0 0.0
    %1562 = vmatpush2.xpose.msra.mxu0 0.0
    %1563 = vmatprep.subr.mxu0 0.0
    %1564 = vmatpush2.xpose.msra.mxu0 0.0
    %1565 = vmatprep.subr.mxu0 0.0
    %1566 = vmatpush2.xpose.msra.mxu0 0.0
    %1567 = vmatprep.subr.mxu0 0.0
    %1568 = vmatpush2.xpose.msra.mxu0 0.0
    %1569 = vmatprep.subr.mxu0 0.0
    %1570 = vmatpush2.xpose.msra.mxu0 0.0
    %1571 = vmatprep.subr.mxu0 0.0
    %1572 = vmatpush2.xpose.msra.mxu0 0.0
    %1573 = vmatprep.subr.mxu0 0.0
    %1574 = vmatpush2.xpose.msra.mxu0 0.0
    %1575 = vmatprep.subr.mxu0 0.0
    %1576 = vmatpush2.xpose.msra.mxu0 0.0
    %1577 = vmatprep.subr.mxu0 0.0
    %1578 = vmatpush2.xpose.msra.mxu0 0.0
    %1579 = vmatprep.subr.mxu0 0.0
    %1580 = vmatpush2.xpose.msra.mxu0 0.0
    %1581 = vmatprep.subr.mxu0 0.0
    %1582 = vmatpush2.xpose.msra.mxu0 0.0
    %1583 = vmatprep.subr.mxu0 0.0
    %1584 = vmatpush2.xpose.msra.mxu0 0.0
    %1585 = vmatprep.mubr.f32.mxu0 0.0
    %1586 = vmatmul.mubr.f32.gmra.mxu0 %v1515
    %v1587 = vpop.f32.mrf.mxu0
    %v1588 = vadd.f32 0.0, %v1587
    %v1589 = vpop.f32.mrf.mxu0
    %1590 = vdwg.mxu0
    %v1591 = vsel %vm566, %v1506, -inf
    %1592 = vmax.xlane.f32.xlu0 %v1591
    %v1593 = vpop.xlane.xlu0 %1592
    %v1594 = vsel %vm566, %v1588, -inf
    %1595 = vmax.xlane.f32.xlu0 %v1594
    %v1596 = vpop.xlane.xlu0 %1595
    %v1597 = vsub.f32 %v1506, %v1593
    %v1598 = vsub.f32 %v1588, %v1596
    %v1599 = vmul.f32 %v1597, 1.442695
    %v1600 = vpow.pop %v1599
    %v1601 = vmul.f32 %v1598, 1.442695
    %v1602 = vpow.pop %v1601
    %v1603 = vsel %vm566, %v1600, 0.0
    %1604 = vadd.xlane.f32.xlu0 %v1603
    %v1605 = vpop.xlane.xlu0 %1604
    %v1606 = vsel %vm566, %v1602, 0.0
    %1607 = vadd.xlane.f32.xlu0 %v1606
    %v1608 = vpop.xlane.xlu0 %1607
    %v1609 = vrcp.pop %v1605
    %v1610 = vmul.f32 %v1600, %v1609
    %v1611 = vrcp.pop %v1608
    %v1612 = vmul.f32 %v1602, %v1611
    %1613 = vrot.lane.b32.xlu0 %v389, 104
    %v1614 = vpop.permute.xlu0 %1613
    %1615 = vrot.lane.b32.xlu0 %v394, 104
    %v1616 = vpop.permute.xlu0 %1615
    %v1620 = vsel %vm566, %v1610, 0
    %1622 = vmatprep.subr.mxu0 0.0
    %1623 = vmatpush1.msra.mxu0 0.0
    %1624 = vmatprep.subr.mxu0 0.0
    %1625 = vmatpush1.msra.mxu0 0.0
    %1626 = vmatprep.subr.mxu0 0.0
    %1627 = vmatpush1.msra.mxu0 0.0
    %1628 = vmatprep.subr.mxu0 0.0
    %1629 = vmatpush1.msra.mxu0 0.0
    %1630 = vmatprep.subr.mxu0 0.0
    %1631 = vmatpush1.msra.mxu0 0.0
    %1632 = vmatprep.subr.mxu0 0.0
    %1633 = vmatpush1.msra.mxu0 0.0
    %1634 = vmatprep.subr.mxu0 0.0
    %1635 = vmatpush1.msra.mxu0 0.0
    %1636 = vmatprep.subr.mxu0 0.0
    %1637 = vmatpush1.msra.mxu0 0.0
    %1638 = vmatprep.subr.mxu0 0.0
    %1639 = vmatpush1.msra.mxu0 0.0
    %1640 = vmatprep.subr.mxu0 0.0
    %1641 = vmatpush1.msra.mxu0 0.0
    %1642 = vmatprep.subr.mxu0 0.0
    %1643 = vmatpush1.msra.mxu0 0.0
    %1644 = vmatprep.subr.mxu0 0.0
    %1645 = vmatpush1.msra.mxu0 0.0
    %1646 = vmatprep.subr.mxu0 0.0
    %1647 = vmatpush1.msra.mxu0 0.0
    %1648 = vmatprep.subr.mxu0 0.0
    %1649 = vmatpush1.msra.mxu0 0.0
    %1650 = vmatprep.subr.mxu0 0.0
    %1651 = vmatpush1.msra.mxu0 %v1616
    %1652 = vmatprep.subr.mxu0 0.0
    %1653 = vmatpush1.msra.mxu0 %v1614
    %1654 = vmatprep.subr.mxu0 0.0
    %1655 = vmatpush2.msra.mxu0 0.0
    %1656 = vmatprep.subr.mxu0 0.0
    %1657 = vmatpush2.msra.mxu0 0.0
    %1658 = vmatprep.subr.mxu0 0.0
    %1659 = vmatpush2.msra.mxu0 0.0
    %1660 = vmatprep.subr.mxu0 0.0
    %1661 = vmatpush2.msra.mxu0 0.0
    %1662 = vmatprep.subr.mxu0 0.0
    %1663 = vmatpush2.msra.mxu0 0.0
    %1664 = vmatprep.subr.mxu0 0.0
    %1665 = vmatpush2.msra.mxu0 0.0
    %1666 = vmatprep.subr.mxu0 0.0
    %1667 = vmatpush2.msra.mxu0 0.0
    %1668 = vmatprep.subr.mxu0 0.0
    %1669 = vmatpush2.msra.mxu0 0.0
    %1670 = vmatprep.subr.mxu0 0.0
    %1671 = vmatpush2.msra.mxu0 0.0
    %1672 = vmatprep.subr.mxu0 0.0
    %1673 = vmatpush2.msra.mxu0 0.0
    %1674 = vmatprep.subr.mxu0 0.0
    %1675 = vmatpush2.msra.mxu0 0.0
    %1676 = vmatprep.subr.mxu0 0.0
    %1677 = vmatpush2.msra.mxu0 0.0
    %1678 = vmatprep.subr.mxu0 0.0
    %1679 = vmatpush2.msra.mxu0 0.0
    %1680 = vmatprep.subr.mxu0 0.0
    %1681 = vmatpush2.msra.mxu0 0.0
    %1682 = vmatprep.subr.mxu0 0.0
    %1683 = vmatpush2.msra.mxu0 0.0
    %1684 = vmatprep.subr.mxu0 0.0
    %1685 = vmatpush2.msra.mxu0 0.0
    %1686 = vmatprep.mubr.f32.mxu0 0.0
    %1687 = vmatmul.mubr.f32.gmra.mxu0 %v1620
    %v1688 = vpop.f32.mrf.mxu0
    %v1689 = vadd.f32 0.0, %v1688
    %v1690 = vpop.f32.mrf.mxu0
    %1691 = vdwg.mxu0
    %1692 = vrot.lane.b32.xlu0 %v399, 104
    %v1693 = vpop.permute.xlu0 %1692
    %1694 = vrot.lane.b32.xlu0 %v404, 104
    %v1695 = vpop.permute.xlu0 %1694
    %v1699 = vsel %vm566, %v1612, 0
    %1701 = vmatprep.subr.mxu0 0.0
    %1702 = vmatpush1.msra.mxu0 0.0
    %1703 = vmatprep.subr.mxu0 0.0
    %1704 = vmatpush1.msra.mxu0 0.0
    %1705 = vmatprep.subr.mxu0 0.0
    %1706 = vmatpush1.msra.mxu0 0.0
    %1707 = vmatprep.subr.mxu0 0.0
    %1708 = vmatpush1.msra.mxu0 0.0
    %1709 = vmatprep.subr.mxu0 0.0
    %1710 = vmatpush1.msra.mxu0 0.0
    %1711 = vmatprep.subr.mxu0 0.0
    %1712 = vmatpush1.msra.mxu0 0.0
    %1713 = vmatprep.subr.mxu0 0.0
    %1714 = vmatpush1.msra.mxu0 0.0
    %1715 = vmatprep.subr.mxu0 0.0
    %1716 = vmatpush1.msra.mxu0 0.0
    %1717 = vmatprep.subr.mxu0 0.0
    %1718 = vmatpush1.msra.mxu0 0.0
    %1719 = vmatprep.subr.mxu0 0.0
    %1720 = vmatpush1.msra.mxu0 0.0
    %1721 = vmatprep.subr.mxu0 0.0
    %1722 = vmatpush1.msra.mxu0 0.0
    %1723 = vmatprep.subr.mxu0 0.0
    %1724 = vmatpush1.msra.mxu0 0.0
    %1725 = vmatprep.subr.mxu0 0.0
    %1726 = vmatpush1.msra.mxu0 0.0
    %1727 = vmatprep.subr.mxu0 0.0
    %1728 = vmatpush1.msra.mxu0 0.0
    %1729 = vmatprep.subr.mxu0 0.0
    %1730 = vmatpush1.msra.mxu0 %v1695
    %1731 = vmatprep.subr.mxu0 0.0
    %1732 = vmatpush1.msra.mxu0 %v1693
    %1733 = vmatprep.subr.mxu0 0.0
    %1734 = vmatpush2.msra.mxu0 0.0
    %1735 = vmatprep.subr.mxu0 0.0
    %1736 = vmatpush2.msra.mxu0 0.0
    %1737 = vmatprep.subr.mxu0 0.0
    %1738 = vmatpush2.msra.mxu0 0.0
    %1739 = vmatprep.subr.mxu0 0.0
    %1740 = vmatpush2.msra.mxu0 0.0
    %1741 = vmatprep.subr.mxu0 0.0
    %1742 = vmatpush2.msra.mxu0 0.0
    %1743 = vmatprep.subr.mxu0 0.0
    %1744 = vmatpush2.msra.mxu0 0.0
    %1745 = vmatprep.subr.mxu0 0.0
    %1746 = vmatpush2.msra.mxu0 0.0
    %1747 = vmatprep.subr.mxu0 0.0
    %1748 = vmatpush2.msra.mxu0 0.0
    %1749 = vmatprep.subr.mxu0 0.0
    %1750 = vmatpush2.msra.mxu0 0.0
    %1751 = vmatprep.subr.mxu0 0.0
    %1752 = vmatpush2.msra.mxu0 0.0
    %1753 = vmatprep.subr.mxu0 0.0
    %1754 = vmatpush2.msra.mxu0 0.0
    %1755 = vmatprep.subr.mxu0 0.0
    %1756 = vmatpush2.msra.mxu0 0.0
    %1757 = vmatprep.subr.mxu0 0.0
    %1758 = vmatpush2.msra.mxu0 0.0
    %1759 = vmatprep.subr.mxu0 0.0
    %1760 = vmatpush2.msra.mxu0 0.0
    %1761 = vmatprep.subr.mxu0 0.0
    %1762 = vmatpush2.msra.mxu0 0.0
    %1763 = vmatprep.subr.mxu0 0.0
    %1764 = vmatpush2.msra.mxu0 0.0
    %1765 = vmatprep.mubr.f32.mxu0 0.0
    %1766 = vmatmul.mubr.f32.gmra.mxu0 %v1699
    %v1767 = vpop.f32.mrf.mxu0
    %v1768 = vadd.f32 0.0, %v1767
    %v1769 = vpop.f32.mrf.mxu0
    %1770 = vdwg.mxu0
    %1773 = vrot.lane.b32.xlu0 %v999, 8
    %v1774 = vpop.permute.xlu0 %1773
    %1775 = vrot.lane.b32.xlu0 %v1080, 8
    %v1776 = vpop.permute.xlu0 %1775
    %1781 = vrot.lane.b32.xlu0 %v1345, 16
    %v1782 = vpop.permute.xlu0 %1781
    %1783 = vrot.lane.b32.xlu0 %v1424, 16
    %v1784 = vpop.permute.xlu0 %1783
    %1789 = vrot.lane.b32.xlu0 %v1689, 24
    %v1790 = vpop.permute.xlu0 %1789
    %1791 = vrot.lane.b32.xlu0 %v1768, 24
    %v1792 = vpop.permute.xlu0 %1791
    %v1795 = vsel %vm407, %v659, %v1774
    %v1796 = vsel %vm407, %v732, %v1776
    %v1797 = vsel %vm566, %v1795, %v1782
    %v1798 = vsel %vm566, %v1796, %v1784
    %vm1799 = vcmask 195584
    %v1800 = vsel %vm1799, %v1797, %v1790
    %v1801 = vsel %vm1799, %v1798, %v1792
    %v1802 = vld [vmem:[#allocation11] sm:$0xff]
    %v1803 = vld [vmem:[#allocation11 + $0x8] sm:$0xff]
    %v1804 = vld [vmem:[#allocation11 + $0x10] sm:$0xff]
    %v1805 = vld [vmem:[#allocation11 + $0x18] sm:$0xff]
    %v1806 = vlaneseq
    %v1807 = vshrl.u32 %v1806, 7
    %v1808 = vsub.s32 0, %v1807
    %v1809 = vrot.slane %v118, %v1808
    %v1811 = vsel %vm127, %v1800, 0
    %v1814 = vsel %vm127, %v1801, 0
    %1816 = vmatprep.subr.mxu0 0.0
    %1817 = vmatpush1.msra.mxu0 0.0
    %1818 = vmatprep.subr.mxu0 0.0
    %1819 = vmatpush1.msra.mxu0 0.0
    %1820 = vmatprep.subr.mxu0 0.0
    %1821 = vmatpush1.msra.mxu0 0.0
    %1822 = vmatprep.subr.mxu0 0.0
    %1823 = vmatpush1.msra.mxu0 0.0
    %1824 = vmatprep.subr.mxu0 0.0
    %1825 = vmatpush1.msra.mxu0 0.0
    %1826 = vmatprep.subr.mxu0 0.0
    %1827 = vmatpush1.msra.mxu0 0.0
    %1828 = vmatprep.subr.mxu0 0.0
    %1829 = vmatpush1.msra.mxu0 0.0
    %1830 = vmatprep.subr.mxu0 0.0
    %1831 = vmatpush1.msra.mxu0 0.0
    %1832 = vmatprep.subr.mxu0 0.0
    %1833 = vmatpush1.msra.mxu0 0.0
    %1834 = vmatprep.subr.mxu0 0.0
    %1835 = vmatpush1.msra.mxu0 0.0
    %1836 = vmatprep.subr.mxu0 0.0
    %1837 = vmatpush1.msra.mxu0 0.0
    %1838 = vmatprep.subr.mxu0 0.0
    %1839 = vmatpush1.msra.mxu0 0.0
    %1840 = vmatprep.subr.mxu0 0.0
    %1841 = vmatpush1.msra.mxu0 %v1805
    %1842 = vmatprep.subr.mxu0 0.0
    %1843 = vmatpush1.msra.mxu0 %v1804
    %1844 = vmatprep.subr.mxu0 0.0
    %1845 = vmatpush1.msra.mxu0 %v1803
    %1846 = vmatprep.subr.mxu0 0.0
    %1847 = vmatpush1.msra.mxu0 %v1802
    %1848 = vmatprep.subr.mxu0 0.0
    %1849 = vmatpush2.msra.mxu0 0.0
    %1850 = vmatprep.subr.mxu0 0.0
    %1851 = vmatpush2.msra.mxu0 0.0
    %1852 = vmatprep.subr.mxu0 0.0
    %1853 = vmatpush2.msra.mxu0 0.0
    %1854 = vmatprep.subr.mxu0 0.0
    %1855 = vmatpush2.msra.mxu0 0.0
    %1856 = vmatprep.subr.mxu0 0.0
    %1857 = vmatpush2.msra.mxu0 0.0
    %1858 = vmatprep.subr.mxu0 0.0
    %1859 = vmatpush2.msra.mxu0 0.0
    %1860 = vmatprep.subr.mxu0 0.0
    %1861 = vmatpush2.msra.mxu0 0.0
    %1862 = vmatprep.subr.mxu0 0.0
    %1863 = vmatpush2.msra.mxu0 0.0
    %1864 = vmatprep.subr.mxu0 0.0
    %1865 = vmatpush2.msra.mxu0 0.0
    %1866 = vmatprep.subr.mxu0 0.0
    %1867 = vmatpush2.msra.mxu0 0.0
    %1868 = vmatprep.subr.mxu0 0.0
    %1869 = vmatpush2.msra.mxu0 0.0
    %1870 = vmatprep.subr.mxu0 0.0
    %1871 = vmatpush2.msra.mxu0 0.0
    %1872 = vmatprep.subr.mxu0 0.0
    %1873 = vmatpush2.msra.mxu0 0.0
    %1874 = vmatprep.subr.mxu0 0.0
    %1875 = vmatpush2.msra.mxu0 0.0
    %1876 = vmatprep.subr.mxu0 0.0
    %1877 = vmatpush2.msra.mxu0 0.0
    %1878 = vmatprep.subr.mxu0 0.0
    %1879 = vmatpush2.msra.mxu0 0.0
    %1880 = vmatprep.mubr.f32.mxu0 0.0
    %1881 = vmatmul.mubr.f32.gmra.mxu0 %v1811
    %v1882 = vpop.f32.mrf.mxu0
    %v1883 = vadd.f32 %v1809, %v1882
    %v1884 = vpop.f32.mrf.mxu0
    %1885 = vmatprep.mubr.f32.mxu0 0.0
    %1886 = vmatmul.mubr.f32.gmra.mxu0 %v1814
    %v1887 = vpop.f32.mrf.mxu0
    %v1888 = vadd.f32 %v1809, %v1887
    %v1889 = vpop.f32.mrf.mxu0
    %1890 = vdwg.mxu0
    %1891 = vst.msk [vmem:[#allocation13] sm:$0xff] %vm127, %v1883
    %1892 = vst.msk [vmem:[#allocation13 + $0x8] sm:$0xff] %vm127, %v1888
    // Predicated region
    $region54: #{tpu_custom_call.1} parent=1 // pred_check
      _
    $region55: #{tpu_custom_call.1} parent=1 // pred_check_branch
      %1894 = sbr.rel (0) target = $region57
    $region56: #{tpu_custom_call.1} parent=1 // pred_region
      %s1896 = ssub.s32 256, 256
      %1897 = vsyncadd [#allocation4], %s1896
      %s1898 = sshll.u32 [#allocation13], 4
      %s1899 = int_to_ptr.vmem [resolvable:$true] %s1898
      %1904 = dma.vmem_to_hbm [thread:$0]  %s1899, 256, %s7, [#allocation4], 128, 128, 8
    $region57: #{tpu_custom_call.1} parent=1 // pred_fallthru
      _
    // Predicated region
    $region58: #{tpu_custom_call.1} parent=1 // pred_check
      _
    $region59: #{tpu_custom_call.1} parent=1 // pred_check_branch
      %1906 = sbr.rel (0) target = $region61
    $region60: #{tpu_custom_call.1} parent=1 // pred_region
      %1907 = dma.done [#allocation4], 256
    $region61: #{tpu_custom_call.1} parent=1 // pred_fallthru
      _
    %1908 = vsyncpa [#allocation3], 1
    %1909 = vsyncpa [#allocation6], 1
    %1910 = vsyncpa [#allocation9], 1
    %1911 = vsyncpa [#allocation12], 1
    %1912 = vsyncpa [#allocation4], 1

</llo_original>
